<compile_context>
chip_gen: v7x
topology: tpu7x:2x2x1
jax: 0.10.0
libtpu: 0.0.40
codegen_flags: <defaults>
</compile_context>

<pallas_src>
import jax
import jax.numpy as jnp
import numpy as np
from jax.experimental import pallas as pl
from jax.experimental.pallas import tpu as pltpu

DT = 0.1


# ----------------------------------------------------------------------------
# Fused Pallas kernel
# ----------------------------------------------------------------------------
def _full_spec(shape):
    nd = len(shape)
    return pl.BlockSpec(shape, lambda *_: (0,) * nd)


def _fused_forward_kernel(lidar_ref, odom_ref,
                          m1_ref, b1_ref, m2_ref, b2_ref, m3_ref, b3_ref,
                          wf_ref, bf_ref, wq_ref, wbig_ref, xic_ref, o_ref):
    f32 = jnp.float32
    x = lidar_ref[...]                                                    # (B, L)
    h = jnp.maximum(jnp.dot(x, m1_ref[...], preferred_element_type=f32)
                    + b1_ref[...], 0.0)                                   # (B, 16*L/2)
    h = jnp.maximum(jnp.dot(h, m2_ref[...], preferred_element_type=f32)
                    + b2_ref[...], 0.0)                                   # (B, 32*L/4)
    h = jnp.maximum(jnp.dot(h, m3_ref[...], preferred_element_type=f32)
                    + b3_ref[...], 0.0)                                   # (B, 64*L/8)
    z = jnp.dot(h, wf_ref[...], preferred_element_type=f32) + bf_ref[...]  # (B, latent)

    odom = odom_ref[...]                                                  # (B, 3)
    state = jnp.concatenate([z, odom], axis=1)                            # (B, D)

    # quadratic pre-products: t[:, o*D+j] = sum_i s_i * Wq[o, i, j]
    t = jnp.dot(state, wq_ref[...], preferred_element_type=f32)           # (B, 3D)
    srep = jnp.concatenate([state, state, state], axis=1)                 # (B, 3D)
    feats = jnp.concatenate(
        [state, jnp.sin(state), jnp.cos(state), t * srep], axis=1)        # (B, 6D)
    dxyz = (jnp.dot(feats, wbig_ref[...], preferred_element_type=f32)
            + xic_ref[...])                                               # (B, 3)
    o_ref[...] = odom + DT * dxyz


def forward(params, lidar_in, odom_in):
    B = lidar_in.shape[0]
    args = (lidar_in, odom_in,
            params["m1"], params["b1v"], params["m2"], params["b2v"],
            params["m3"], params["b3v"], params["wfm"], params["bfv"],
            params["wq_cat"], params["w_big"], params["xi_const"])
    return pl.pallas_call(
        _fused_forward_kernel,
        out_shape=jax.ShapeDtypeStruct((B, 3), jnp.float32),
        grid=(1,),
        in_specs=[_full_spec(a.shape) for a in args],
        out_specs=_full_spec((B, 3)),
        compiler_params=pltpu.CompilerParams(
            dimension_semantics=("arbitrary",)),
    )(*args)


# ----------------------------------------------------------------------------
# Parameter setup (exact, setup-time-only rearrangements of PyTorch params)
# ----------------------------------------------------------------------------
def _conv_as_matmul(w, b, lin, stride=2, pad=2):
    """Fold a PyTorch Conv1d(k, stride=2, padding=2) into a dense matmul.

    Returns (M, bvec, lout) such that, with channel-major NCW flattening
    (index = c*L + s, exactly torch's .view(B,-1) order):
        flat(conv(x)) == flat(x) @ M + bvec
    M[ci*lin + s, co*lout + t] = w[co, ci, k]  where s = stride*t + k - pad.
    """
    w = np.asarray(w, np.float32)
    b = np.asarray(b, np.float32)
    cout, cin, ksz = w.shape
    lout = (lin + 2 * pad - ksz) // stride + 1
    m = np.zeros((cin * lin, cout * lout), np.float32)
    rows_ci = np.arange(cin) * lin
    cols_co = np.arange(cout) * lout
    for t in range(lout):
        for k in range(ksz):
            s = stride * t + k - pad
            if 0 <= s < lin:
                m[np.ix_(rows_ci + s, cols_co + t)] = w[:, :, k].T
    bvec = np.repeat(b, lout)[None, :]                                    # (1, cout*lout)
    return jnp.asarray(m), jnp.asarray(bvec), lout


def init_params(key, lidar_input_dim=64, latent_dim=16):
    ks = jax.random.split(key, 9)
    D = latent_dim + 3
    nq = D * (D + 1) // 2
    nlib = 1 + D + nq + 2 * D
    s = 0.05
    p = {}
    # raw PyTorch-layout parameters (used by the pure-JAX reference)
    p["w1"] = jax.random.normal(ks[0], (16, 1, 5), jnp.float32) * s
    p["b1"] = jax.random.normal(ks[1], (16,), jnp.float32) * s
    p["w2"] = jax.random.normal(ks[2], (32, 16, 5), jnp.float32) * s
    p["b2"] = jax.random.normal(ks[3], (32,), jnp.float32) * s
    p["w3"] = jax.random.normal(ks[4], (64, 32, 5), jnp.float32) * s
    p["b3"] = jax.random.normal(ks[5], (64,), jnp.float32) * s
    flat = 64 * (lidar_input_dim // 8)
    p["wf"] = jax.random.normal(ks[6], (latent_dim, flat), jnp.float32) * s
    p["bf"] = jax.random.normal(ks[7], (latent_dim,), jnp.float32) * s
    p["xi_full"] = jax.random.normal(ks[8], (3, nlib), jnp.float32) * s   # torch Linear weight

    # --- folded conv layers (exact rearrangement, setup-time only) ---
    p["m1"], p["b1v"], l1 = _conv_as_matmul(p["w1"], p["b1"], lidar_input_dim)
    p["m2"], p["b2v"], l2 = _conv_as_matmul(p["w2"], p["b2"], l1)
    p["m3"], p["b3v"], l3 = _conv_as_matmul(p["w3"], p["b3"], l2)
    assert 64 * l3 == flat
    p["wfm"] = p["wf"].T                                                  # (flat, latent)
    p["bfv"] = p["bf"][None, :]                                           # (1, latent)

    # --- SINDy coefficient decomposition ---
    xi = np.asarray(p["xi_full"], np.float32)
    xi_const = xi[:, 0:1].T                                               # (1, 3)
    xi_lin = xi[:, 1:1 + D].T                                             # (D, 3)
    iu = np.triu_indices(D)                                               # (i<=j), torch loop order
    wq = np.zeros((3, D, D), np.float32)
    wq[:, iu[0], iu[1]] = xi[:, 1 + D:1 + D + nq]
    off = 1 + D + nq
    xi_sin = xi[:, off:off + D].T                                         # (D, 3)
    xi_cos = xi[:, off + D:off + 2 * D].T                                 # (D, 3)
    # wq_cat[i, o*D + j] = wq[o, i, j]
    wq_cat = np.transpose(wq, (1, 0, 2)).reshape(D, 3 * D)
    # group-sum selector: quad_o = sum_j (state @ wq_cat)[:, o*D+j] * state[:, j]
    g = np.zeros((3 * D, 3), np.float32)
    for o in range(3):
        g[o * D:(o + 1) * D, o] = 1.0
    p["wq_cat"] = jnp.asarray(wq_cat)                                     # (D, 3D)
    p["w_big"] = jnp.asarray(
        np.concatenate([xi_lin, xi_sin, xi_cos, g], axis=0))              # (6D, 3)
    p["xi_const"] = jnp.asarray(xi_const)                                 # (1, 3)
    return p


# ----------------------------------------------------------------------------
# Pure-JAX reference (mirrors the PyTorch forward) for a correctness check
# ----------------------------------------------------------------------------
def reference(params, lidar_in, odom_in):
    B = lidar_in.shape[0]

    def conv(x, w, b):
        y = jax.lax.conv_general_dilated(
            x, w, window_strides=(2,), padding=[(2, 2)],
            dimension_numbers=("NCH", "OIH", "NCH"))
        return jax.nn.relu(y + b[None, :, None])

    x = lidar_in[:, None, :]
    x = conv(x, params["w1"], params["b1"])
    x = conv(x, params["w2"], params["b2"])
    x = conv(x, params["w3"], params["b3"])
    x = x.reshape(B, -1)
    z = x @ params["wf"].T + params["bf"]
    state = jnp.concatenate([z, odom_in], axis=1)
    D = state.shape[1]
    lib = [jnp.ones((B, 1), jnp.float32), state]
    for i in range(D):
        for j in range(i, D):
            lib.append(state[:, i:i + 1] * state[:, j:j + 1])
    lib.append(jnp.sin(state))
    lib.append(jnp.cos(state))
    lib = jnp.concatenate(lib, axis=1)
    dxyz = lib @ params["xi_full"].T
    return odom_in + DT * dxyz


if __name__ == "__main__":
    B = 4
    LIDAR = 64       # small stand-in for the 360-beam scan (divisible by 8)
    LATENT = 16

    key = jax.random.PRNGKey(0)
    kp, kl, ko = jax.random.split(key, 3)
    params = init_params(kp, lidar_input_dim=LIDAR, latent_dim=LATENT)
    lidar_in = jax.random.normal(kl, (B, LIDAR), jnp.float32)
    odom_in = jax.random.normal(ko, (B, 3), jnp.float32)

    preds = jax.block_until_ready(forward(params, lidar_in, odom_in))
    ref = reference(params, lidar_in, odom_in)

    assert preds.shape == (B, 3)
    np.testing.assert_allclose(np.asarray(preds), np.asarray(ref),
                               rtol=1e-4, atol=1e-4)
    print("KERNEL_OK")
</pallas_src>

<mosaic_0001>
module attributes {stable_mosaic.version = 11 : i64} {
  func.func @_fused_forward_kernel(%arg0: i32, %arg1: memref<4x64xf32, #tpu.memory_space<vmem>>, %arg2: memref<4x3xf32, #tpu.memory_space<vmem>>, %arg3: memref<64x512xf32, #tpu.memory_space<vmem>>, %arg4: memref<1x512xf32, #tpu.memory_space<vmem>>, %arg5: memref<512x512xf32, #tpu.memory_space<vmem>>, %arg6: memref<1x512xf32, #tpu.memory_space<vmem>>, %arg7: memref<512x512xf32, #tpu.memory_space<vmem>>, %arg8: memref<1x512xf32, #tpu.memory_space<vmem>>, %arg9: memref<512x16xf32, #tpu.memory_space<vmem>>, %arg10: memref<1x16xf32, #tpu.memory_space<vmem>>, %arg11: memref<19x57xf32, #tpu.memory_space<vmem>>, %arg12: memref<114x3xf32, #tpu.memory_space<vmem>>, %arg13: memref<1x3xf32, #tpu.memory_space<vmem>>, %arg14: memref<4x3xf32, #tpu.memory_space<vmem>>) attributes {dimension_semantics = [#tpu.dimension_semantics<arbitrary>], iteration_bounds = array<i64: 1>, scalar_prefetch = 0 : i64, scratch_operands = 0 : i64, tpu.core_type = #tpu.core_type<tc>, window_params = [{pipeline_mode = #tpu.pipeline_mode<synchronous>, transform_indices = @transform_0, window_bounds = array<i64: 4, 64>}, {pipeline_mode = #tpu.pipeline_mode<synchronous>, transform_indices = @transform_1, window_bounds = array<i64: 4, 3>}, {pipeline_mode = #tpu.pipeline_mode<synchronous>, transform_indices = @transform_2, window_bounds = array<i64: 64, 512>}, {pipeline_mode = #tpu.pipeline_mode<synchronous>, transform_indices = @transform_3, window_bounds = array<i64: 1, 512>}, {pipeline_mode = #tpu.pipeline_mode<synchronous>, transform_indices = @transform_4, window_bounds = array<i64: 512, 512>}, {pipeline_mode = #tpu.pipeline_mode<synchronous>, transform_indices = @transform_5, window_bounds = array<i64: 1, 512>}, {pipeline_mode = #tpu.pipeline_mode<synchronous>, transform_indices = @transform_6, window_bounds = array<i64: 512, 512>}, {pipeline_mode = #tpu.pipeline_mode<synchronous>, transform_indices = @transform_7, window_bounds = array<i64: 1, 512>}, {pipeline_mode = #tpu.pipeline_mode<synchronous>, transform_indices = @transform_8, window_bounds = array<i64: 512, 16>}, {pipeline_mode = #tpu.pipeline_mode<synchronous>, transform_indices = @transform_9, window_bounds = array<i64: 1, 16>}, {pipeline_mode = #tpu.pipeline_mode<synchronous>, transform_indices = @transform_10, window_bounds = array<i64: 19, 57>}, {pipeline_mode = #tpu.pipeline_mode<synchronous>, transform_indices = @transform_11, window_bounds = array<i64: 114, 3>}, {pipeline_mode = #tpu.pipeline_mode<synchronous>, transform_indices = @transform_12, window_bounds = array<i64: 1, 3>}, {pipeline_mode = #tpu.pipeline_mode<synchronous>, transform_indices = @transform_13, window_bounds = array<i64: 4, 3>}]} {
    %c0 = arith.constant 0 : index
    %c0_0 = arith.constant 0 : index
    %0 = vector.load %arg1[%c0, %c0_0] : memref<4x64xf32, #tpu.memory_space<vmem>>, vector<4x64xf32>
    %c0_1 = arith.constant 0 : index
    %c0_2 = arith.constant 0 : index
    %1 = vector.load %arg3[%c0_1, %c0_2] : memref<64x512xf32, #tpu.memory_space<vmem>>, vector<64x512xf32>
    %cst = arith.constant dense<0.000000e+00> : vector<4x512xf32>
    %2 = tpu.matmul %0, %1, %cst {dimension_numbers = #tpu.dot_dimension_numbers<[1], [0], [0], [1], [0, 0, 1, 1], [], []>} : vector<4x64xf32>, vector<64x512xf32>, vector<4x512xf32> -> vector<4x512xf32>
    %c0_3 = arith.constant 0 : index
    %c0_4 = arith.constant 0 : index
    %3 = vector.load %arg4[%c0_3, %c0_4] : memref<1x512xf32, #tpu.memory_space<vmem>>, vector<1x512xf32>
    %4 = vector.broadcast %3 : vector<1x512xf32> to vector<4x512xf32>
    %5 = arith.addf %2, %4 : vector<4x512xf32>
    %cst_5 = arith.constant 0.000000e+00 : f32
    %6 = vector.broadcast %cst_5 : f32 to vector<4x512xf32>
    %7 = arith.maximumf %5, %6 : vector<4x512xf32>
    %c0_6 = arith.constant 0 : index
    %c0_7 = arith.constant 0 : index
    %8 = vector.load %arg5[%c0_6, %c0_7] : memref<512x512xf32, #tpu.memory_space<vmem>>, vector<512x512xf32>
    %cst_8 = arith.constant dense<0.000000e+00> : vector<4x512xf32>
    %9 = tpu.matmul %7, %8, %cst_8 {dimension_numbers = #tpu.dot_dimension_numbers<[1], [0], [0], [1], [0, 0, 1, 1], [], []>} : vector<4x512xf32>, vector<512x512xf32>, vector<4x512xf32> -> vector<4x512xf32>
    %c0_9 = arith.constant 0 : index
    %c0_10 = arith.constant 0 : index
    %10 = vector.load %arg6[%c0_9, %c0_10] : memref<1x512xf32, #tpu.memory_space<vmem>>, vector<1x512xf32>
    %11 = vector.broadcast %10 : vector<1x512xf32> to vector<4x512xf32>
    %12 = arith.addf %9, %11 : vector<4x512xf32>
    %cst_11 = arith.constant 0.000000e+00 : f32
    %13 = vector.broadcast %cst_11 : f32 to vector<4x512xf32>
    %14 = arith.maximumf %12, %13 : vector<4x512xf32>
    %c0_12 = arith.constant 0 : index
    %c0_13 = arith.constant 0 : index
    %15 = vector.load %arg7[%c0_12, %c0_13] : memref<512x512xf32, #tpu.memory_space<vmem>>, vector<512x512xf32>
    %cst_14 = arith.constant dense<0.000000e+00> : vector<4x512xf32>
    %16 = tpu.matmul %14, %15, %cst_14 {dimension_numbers = #tpu.dot_dimension_numbers<[1], [0], [0], [1], [0, 0, 1, 1], [], []>} : vector<4x512xf32>, vector<512x512xf32>, vector<4x512xf32> -> vector<4x512xf32>
    %c0_15 = arith.constant 0 : index
    %c0_16 = arith.constant 0 : index
    %17 = vector.load %arg8[%c0_15, %c0_16] : memref<1x512xf32, #tpu.memory_space<vmem>>, vector<1x512xf32>
    %18 = vector.broadcast %17 : vector<1x512xf32> to vector<4x512xf32>
    %19 = arith.addf %16, %18 : vector<4x512xf32>
    %cst_17 = arith.constant 0.000000e+00 : f32
    %20 = vector.broadcast %cst_17 : f32 to vector<4x512xf32>
    %21 = arith.maximumf %19, %20 : vector<4x512xf32>
    %c0_18 = arith.constant 0 : index
    %c0_19 = arith.constant 0 : index
    %22 = vector.load %arg9[%c0_18, %c0_19] : memref<512x16xf32, #tpu.memory_space<vmem>>, vector<512x16xf32>
    %cst_20 = arith.constant dense<0.000000e+00> : vector<4x16xf32>
    %23 = tpu.matmul %21, %22, %cst_20 {dimension_numbers = #tpu.dot_dimension_numbers<[1], [0], [0], [1], [0, 0, 1, 1], [], []>} : vector<4x512xf32>, vector<512x16xf32>, vector<4x16xf32> -> vector<4x16xf32>
    %c0_21 = arith.constant 0 : index
    %c0_22 = arith.constant 0 : index
    %24 = vector.load %arg10[%c0_21, %c0_22] : memref<1x16xf32, #tpu.memory_space<vmem>>, vector<1x16xf32>
    %25 = vector.broadcast %24 : vector<1x16xf32> to vector<4x16xf32>
    %26 = arith.addf %23, %25 : vector<4x16xf32>
    %c0_23 = arith.constant 0 : index
    %c0_24 = arith.constant 0 : index
    %27 = vector.load %arg2[%c0_23, %c0_24] : memref<4x3xf32, #tpu.memory_space<vmem>>, vector<4x3xf32>
    %28 = tpu.concatenate %26, %27 in 1 : vector<4x16xf32>, vector<4x3xf32> -> vector<4x19xf32>
    %c0_25 = arith.constant 0 : index
    %c0_26 = arith.constant 0 : index
    %29 = vector.load %arg11[%c0_25, %c0_26] : memref<19x57xf32, #tpu.memory_space<vmem>>, vector<19x57xf32>
    %cst_27 = arith.constant dense<0.000000e+00> : vector<4x57xf32>
    %30 = tpu.matmul %28, %29, %cst_27 {dimension_numbers = #tpu.dot_dimension_numbers<[1], [0], [0], [1], [0, 0, 1, 1], [], []>} : vector<4x19xf32>, vector<19x57xf32>, vector<4x57xf32> -> vector<4x57xf32>
    %31 = tpu.concatenate %28, %28, %28 in 1 : vector<4x19xf32>, vector<4x19xf32>, vector<4x19xf32> -> vector<4x57xf32>
    %32 = math.sin %28 : vector<4x19xf32>
    %33 = math.cos %28 : vector<4x19xf32>
    %34 = arith.mulf %30, %31 : vector<4x57xf32>
    %35 = tpu.concatenate %28, %32, %33, %34 in 1 : vector<4x19xf32>, vector<4x19xf32>, vector<4x19xf32>, vector<4x57xf32> -> vector<4x114xf32>
    %c0_28 = arith.constant 0 : index
    %c0_29 = arith.constant 0 : index
    %36 = vector.load %arg12[%c0_28, %c0_29] : memref<114x3xf32, #tpu.memory_space<vmem>>, vector<114x3xf32>
    %cst_30 = arith.constant dense<0.000000e+00> : vector<4x3xf32>
    %37 = tpu.matmul %35, %36, %cst_30 {dimension_numbers = #tpu.dot_dimension_numbers<[1], [0], [0], [1], [0, 0, 1, 1], [], []>} : vector<4x114xf32>, vector<114x3xf32>, vector<4x3xf32> -> vector<4x3xf32>
    %c0_31 = arith.constant 0 : index
    %c0_32 = arith.constant 0 : index
    %38 = vector.load %arg13[%c0_31, %c0_32] : memref<1x3xf32, #tpu.memory_space<vmem>>, vector<1x3xf32>
    %39 = vector.broadcast %38 : vector<1x3xf32> to vector<4x3xf32>
    %40 = arith.addf %37, %39 : vector<4x3xf32>
    %cst_33 = arith.constant 1.000000e-01 : f32
    %41 = vector.broadcast %cst_33 : f32 to vector<4x3xf32>
    %42 = arith.mulf %41, %40 : vector<4x3xf32>
    %43 = arith.addf %27, %42 : vector<4x3xf32>
    %c0_34 = arith.constant 0 : index
    %c0_35 = arith.constant 0 : index
    %44 = vector.load %arg14[%c0_34, %c0_35] : memref<4x3xf32, #tpu.memory_space<vmem>>, vector<4x3xf32>
    tpu.vector_store %arg14[%c0_34, %c0_35], %43 {strides = array<i32>} : memref<4x3xf32, #tpu.memory_space<vmem>>, vector<4x3xf32>,
    return
  }
  func.func @transform_0(%arg0: i32) -> (i32, i32) {
    %c0_i32 = arith.constant 0 : i32
    %c0_i32_0 = arith.constant 0 : i32
    %c0_i32_1 = arith.constant 0 : i32
    return %c0_i32, %c0_i32_0 : i32, i32
  }
  func.func @transform_1(%arg0: i32) -> (i32, i32) {
    %c0_i32 = arith.constant 0 : i32
    %c0_i32_0 = arith.constant 0 : i32
    %c0_i32_1 = arith.constant 0 : i32
    return %c0_i32, %c0_i32_0 : i32, i32
  }
  func.func @transform_2(%arg0: i32) -> (i32, i32) {
    %c0_i32 = arith.constant 0 : i32
    %c0_i32_0 = arith.constant 0 : i32
    %c0_i32_1 = arith.constant 0 : i32
    return %c0_i32, %c0_i32_0 : i32, i32
  }
  func.func @transform_3(%arg0: i32) -> (i32, i32) {
    %c0_i32 = arith.constant 0 : i32
    %c0_i32_0 = arith.constant 0 : i32
    %c0_i32_1 = arith.constant 0 : i32
    return %c0_i32, %c0_i32_0 : i32, i32
  }
  func.func @transform_4(%arg0: i32) -> (i32, i32) {
    %c0_i32 = arith.constant 0 : i32
    %c0_i32_0 = arith.constant 0 : i32
    %c0_i32_1 = arith.constant 0 : i32
    return %c0_i32, %c0_i32_0 : i32, i32
  }
  func.func @transform_5(%arg0: i32) -> (i32, i32) {
    %c0_i32 = arith.constant 0 : i32
    %c0_i32_0 = arith.constant 0 : i32
    %c0_i32_1 = arith.constant 0 : i32
    return %c0_i32, %c0_i32_0 : i32, i32
  }
  func.func @transform_6(%arg0: i32) -> (i32, i32) {
    %c0_i32 = arith.constant 0 : i32
    %c0_i32_0 = arith.constant 0 : i32
    %c0_i32_1 = arith.constant 0 : i32
    return %c0_i32, %c0_i32_0 : i32, i32
  }
  func.func @transform_7(%arg0: i32) -> (i32, i32) {
    %c0_i32 = arith.constant 0 : i32
    %c0_i32_0 = arith.constant 0 : i32
    %c0_i32_1 = arith.constant 0 : i32
    return %c0_i32, %c0_i32_0 : i32, i32
  }
  func.func @transform_8(%arg0: i32) -> (i32, i32) {
    %c0_i32 = arith.constant 0 : i32
    %c0_i32_0 = arith.constant 0 : i32
    %c0_i32_1 = arith.constant 0 : i32
    return %c0_i32, %c0_i32_0 : i32, i32
  }
  func.func @transform_9(%arg0: i32) -> (i32, i32) {
    %c0_i32 = arith.constant 0 : i32
    %c0_i32_0 = arith.constant 0 : i32
    %c0_i32_1 = arith.constant 0 : i32
    return %c0_i32, %c0_i32_0 : i32, i32
  }
  func.func @transform_10(%arg0: i32) -> (i32, i32) {
    %c0_i32 = arith.constant 0 : i32
    %c0_i32_0 = arith.constant 0 : i32
    %c0_i32_1 = arith.constant 0 : i32
    return %c0_i32, %c0_i32_0 : i32, i32
  }
  func.func @transform_11(%arg0: i32) -> (i32, i32) {
    %c0_i32 = arith.constant 0 : i32
    %c0_i32_0 = arith.constant 0 : i32
    %c0_i32_1 = arith.constant 0 : i32
    return %c0_i32, %c0_i32_0 : i32, i32
  }
  func.func @transform_12(%arg0: i32) -> (i32, i32) {
    %c0_i32 = arith.constant 0 : i32
    %c0_i32_0 = arith.constant 0 : i32
    %c0_i32_1 = arith.constant 0 : i32
    return %c0_i32, %c0_i32_0 : i32, i32
  }
  func.func @transform_13(%arg0: i32) -> (i32, i32) {
    %c0_i32 = arith.constant 0 : i32
    %c0_i32_0 = arith.constant 0 : i32
    %c0_i32_1 = arith.constant 0 : i32
    return %c0_i32, %c0_i32_0 : i32, i32
  }
}

</mosaic_0001>

<llo_original>
// kernel: tpu_custom_call.1
$region0: #{tpu_custom_call.1}
  #allocation0 [shape = 'u32[]', space=smem, size = 0x4, offset = 0x4, fixed_abs, tag = 'smem constant byte address 0x4 - core index']
  #allocation1 [shape = 'u32[144,128]{1,0:T(1,128)}', space=vmem, size = 0x12000, scoped, tag = 'internal scratch']
  %s0 = inlined_call_operand.vmem [shape: f32[4,64], index: 0, kind: input, shape index: {}]
  %s1 = inlined_call_operand.vmem [shape: f32[4,3], index: 1, kind: input, shape index: {}]
  %s2 = inlined_call_operand.vmem [shape: f32[64,512], index: 2, kind: input, shape index: {}]
  %s3 = inlined_call_operand.vmem [shape: f32[1,512], index: 3, kind: input, shape index: {}]
  %s4 = inlined_call_operand.hbm [shape: f32[512,512], index: 4, kind: input, shape index: {}]
  %s5 = inlined_call_operand.vmem [shape: f32[1,512], index: 5, kind: input, shape index: {}]
  %s6 = inlined_call_operand.hbm [shape: f32[512,512], index: 6, kind: input, shape index: {}]
  %s7 = inlined_call_operand.vmem [shape: f32[1,512], index: 7, kind: input, shape index: {}]
  %s8 = inlined_call_operand.vmem [shape: f32[512,16], index: 8, kind: input, shape index: {}]
  %s9 = inlined_call_operand.vmem [shape: f32[1,16], index: 9, kind: input, shape index: {}]
  %s10 = inlined_call_operand.vmem [shape: f32[19,57], index: 10, kind: input, shape index: {}]
  %s11 = inlined_call_operand.vmem [shape: f32[114,3], index: 11, kind: input, shape index: {}]
  %s12 = inlined_call_operand.vmem [shape: f32[1,3], index: 12, kind: input, shape index: {}]
  %s13 = inlined_call_operand.hbm [shape: f32[4,3], index: 13, kind: output, shape index: {}]
  %s14 = sld [smem:[#allocation0]]
  $region70: #{tpu_custom_call.1} parent=0
    _
  %s16 = ssub.s32 1, %s14
  %s17 = scalar_select 0, %s16, %s14
  $region1: #{tpu_custom_call.1} parent=0
    #allocation2 [shape = 'u8[1048576]{0}', space=vmem, size = 0x100000, scoped, tag = 'input window, operand 4, single buffered']
    #allocation3 [shape = 's32[1]{0}', space=sflag, size = 0x4, scoped, tag = 'scoped memory for tpu_custom_call.1']
    #allocation4 [shape = 's32[1]{0}', space=sflag, size = 0x4, scoped, tag = 'scoped memory for tpu_custom_call.1']
    #allocation5 [shape = 'u8[1048576]{0}', space=vmem, size = 0x100000, scoped, tag = 'input window, operand 6, single buffered']
    #allocation6 [shape = 's32[1]{0}', space=sflag, size = 0x4, scoped, tag = 'scoped memory for tpu_custom_call.1']
    #allocation7 [shape = 'u8[2048]{0}', space=vmem, size = 0x800, scoped, tag = 'output window, operand 0, single buffered']
    %18 = vsyncpa [#allocation3], 0
    %19 = vsyncpa [#allocation6], 0
    %20 = vsyncpa [#allocation4], 0
    // Predicated region
    $region2: #{tpu_custom_call.1} parent=1 // pred_check
      _
    $region3: #{tpu_custom_call.1} parent=1 // pred_check_branch
      %22 = sbr.rel (0) target = $region5
    $region4: #{tpu_custom_call.1} parent=1 // pred_region
      _
    $region5: #{tpu_custom_call.1} parent=1 // pred_fallthru
      _
    // Predicated region
    $region6: #{tpu_custom_call.1} parent=1 // pred_check
      _
    $region7: #{tpu_custom_call.1} parent=1 // pred_check_branch
      %24 = sbr.rel (0) target = $region9
    $region8: #{tpu_custom_call.1} parent=1 // pred_region
      _
    $region9: #{tpu_custom_call.1} parent=1 // pred_fallthru
      _
    // Predicated region
    $region10: #{tpu_custom_call.1} parent=1 // pred_check
      _
    $region11: #{tpu_custom_call.1} parent=1 // pred_check_branch
      %26 = sbr.rel (0) target = $region13
    $region12: #{tpu_custom_call.1} parent=1 // pred_region
      _
    $region13: #{tpu_custom_call.1} parent=1 // pred_fallthru
      _
    // Predicated region
    $region14: #{tpu_custom_call.1} parent=1 // pred_check
      _
    $region15: #{tpu_custom_call.1} parent=1 // pred_check_branch
      %28 = sbr.rel (0) target = $region17
    $region16: #{tpu_custom_call.1} parent=1 // pred_region
      _
    $region17: #{tpu_custom_call.1} parent=1 // pred_fallthru
      _
    // Predicated region
    $region18: #{tpu_custom_call.1} parent=1 // pred_check
      _
    $region19: #{tpu_custom_call.1} parent=1 // pred_check_branch
      %30 = sbr.rel (0) target = $region21
    $region20: #{tpu_custom_call.1} parent=1 // pred_region
      %s32 = ssub.s32 32768, 32768
      %33 = vsyncadd [#allocation3], %s32
      %s34 = sshll.u32 [#allocation2], 4
      %s35 = int_to_ptr.vmem [resolvable:$true] %s34
      %40 = dma.hbm_to_vmem [thread:$0]  %s4, 32768, %s35, [#allocation3], 512, 512, 32
    $region21: #{tpu_custom_call.1} parent=1 // pred_fallthru
      _
    // Predicated region
    $region22: #{tpu_custom_call.1} parent=1 // pred_check
      _
    $region23: #{tpu_custom_call.1} parent=1 // pred_check_branch
      %42 = sbr.rel (0) target = $region25
    $region24: #{tpu_custom_call.1} parent=1 // pred_region
      _
    $region25: #{tpu_custom_call.1} parent=1 // pred_fallthru
      _
    // Predicated region
    $region26: #{tpu_custom_call.1} parent=1 // pred_check
      _
    $region27: #{tpu_custom_call.1} parent=1 // pred_check_branch
      %44 = sbr.rel (0) target = $region29
    $region28: #{tpu_custom_call.1} parent=1 // pred_region
      %s46 = ssub.s32 32768, 32768
      %47 = vsyncadd [#allocation6], %s46
      %s48 = sshll.u32 [#allocation5], 4
      %s49 = int_to_ptr.vmem [resolvable:$true] %s48
      %54 = dma.hbm_to_vmem [thread:$0]  %s6, 32768, %s49, [#allocation6], 512, 512, 32
    $region29: #{tpu_custom_call.1} parent=1 // pred_fallthru
      _
    // Predicated region
    $region30: #{tpu_custom_call.1} parent=1 // pred_check
      _
    $region31: #{tpu_custom_call.1} parent=1 // pred_check_branch
      %56 = sbr.rel (0) target = $region33
    $region32: #{tpu_custom_call.1} parent=1 // pred_region
      _
    $region33: #{tpu_custom_call.1} parent=1 // pred_fallthru
      _
    // Predicated region
    $region34: #{tpu_custom_call.1} parent=1 // pred_check
      _
    $region35: #{tpu_custom_call.1} parent=1 // pred_check_branch
      %58 = sbr.rel (0) target = $region37
    $region36: #{tpu_custom_call.1} parent=1 // pred_region
      _
    $region37: #{tpu_custom_call.1} parent=1 // pred_fallthru
      _
    // Predicated region
    $region38: #{tpu_custom_call.1} parent=1 // pred_check
      _
    $region39: #{tpu_custom_call.1} parent=1 // pred_check_branch
      %60 = sbr.rel (0) target = $region41
    $region40: #{tpu_custom_call.1} parent=1 // pred_region
      _
    $region41: #{tpu_custom_call.1} parent=1 // pred_fallthru
      _
    // Predicated region
    $region42: #{tpu_custom_call.1} parent=1 // pred_check
      _
    $region43: #{tpu_custom_call.1} parent=1 // pred_check_branch
      %62 = sbr.rel (0) target = $region45
    $region44: #{tpu_custom_call.1} parent=1 // pred_region
      _
    $region45: #{tpu_custom_call.1} parent=1 // pred_fallthru
      _
    // Predicated region
    $region46: #{tpu_custom_call.1} parent=1 // pred_check
      _
    $region47: #{tpu_custom_call.1} parent=1 // pred_check_branch
      %64 = sbr.rel (0) target = $region49
    $region48: #{tpu_custom_call.1} parent=1 // pred_region
      _
    $region49: #{tpu_custom_call.1} parent=1 // pred_fallthru
      _
    // Predicated region
    $region50: #{tpu_custom_call.1} parent=1 // pred_check
      _
    $region51: #{tpu_custom_call.1} parent=1 // pred_check_branch
      %66 = sbr.rel (0) target = $region53
    $region52: #{tpu_custom_call.1} parent=1 // pred_region
      _
    $region53: #{tpu_custom_call.1} parent=1 // pred_fallthru
      _
    // Predicated region
    $region54: #{tpu_custom_call.1} parent=1 // pred_check
      _
    $region55: #{tpu_custom_call.1} parent=1 // pred_check_branch
      %68 = sbr.rel (0) target = $region57
    $region56: #{tpu_custom_call.1} parent=1 // pred_region
      %69 = dma.done [#allocation3], 32768
    $region57: #{tpu_custom_call.1} parent=1 // pred_fallthru
      _
    // Predicated region
    $region58: #{tpu_custom_call.1} parent=1 // pred_check
      _
    $region59: #{tpu_custom_call.1} parent=1 // pred_check_branch
      %71 = sbr.rel (0) target = $region61
    $region60: #{tpu_custom_call.1} parent=1 // pred_region
      %72 = dma.done [#allocation6], 32768
    $region61: #{tpu_custom_call.1} parent=1 // pred_fallthru
      _
    %v73 = vld [vmem:[%s0] sm:$0xf]
    %v74 = vld [vmem:[%s2] sm:$0xff]
    %v75 = vld [vmem:[%s2 + $0x8] sm:$0xff]
    %v76 = vld [vmem:[%s2 + $0x10] sm:$0xff]
    %v77 = vld [vmem:[%s2 + $0x18] sm:$0xff]
    %v78 = vld [vmem:[%s2 + $0x20] sm:$0xff]
    %v79 = vld [vmem:[%s2 + $0x28] sm:$0xff]
    %v80 = vld [vmem:[%s2 + $0x30] sm:$0xff]
    %v81 = vld [vmem:[%s2 + $0x38] sm:$0xff]
    %v82 = vld [vmem:[%s2 + $0x40] sm:$0xff]
    %v83 = vld [vmem:[%s2 + $0x48] sm:$0xff]
    %v84 = vld [vmem:[%s2 + $0x50] sm:$0xff]
    %v85 = vld [vmem:[%s2 + $0x58] sm:$0xff]
    %v86 = vld [vmem:[%s2 + $0x60] sm:$0xff]
    %v87 = vld [vmem:[%s2 + $0x68] sm:$0xff]
    %v88 = vld [vmem:[%s2 + $0x70] sm:$0xff]
    %v89 = vld [vmem:[%s2 + $0x78] sm:$0xff]
    %v90 = vld [vmem:[%s2 + $0x80] sm:$0xff]
    %v91 = vld [vmem:[%s2 + $0x88] sm:$0xff]
    %v92 = vld [vmem:[%s2 + $0x90] sm:$0xff]
    %v93 = vld [vmem:[%s2 + $0x98] sm:$0xff]
    %v94 = vld [vmem:[%s2 + $0xa0] sm:$0xff]
    %v95 = vld [vmem:[%s2 + $0xa8] sm:$0xff]
    %v96 = vld [vmem:[%s2 + $0xb0] sm:$0xff]
    %v97 = vld [vmem:[%s2 + $0xb8] sm:$0xff]
    %v98 = vld [vmem:[%s2 + $0xc0] sm:$0xff]
    %v99 = vld [vmem:[%s2 + $0xc8] sm:$0xff]
    %v100 = vld [vmem:[%s2 + $0xd0] sm:$0xff]
    %v101 = vld [vmem:[%s2 + $0xd8] sm:$0xff]
    %v102 = vld [vmem:[%s2 + $0xe0] sm:$0xff]
    %v103 = vld [vmem:[%s2 + $0xe8] sm:$0xff]
    %v104 = vld [vmem:[%s2 + $0xf0] sm:$0xff]
    %v105 = vld [vmem:[%s2 + $0xf8] sm:$0xff]
    %v106 = vld [vmem:[%s3] sm:$0xf]
    %v108 = vlaneseq
    %v109 = vshrl.u32 %v108, 7
    %v110 = vsub.s32 0, %v109
    %v111 = vrot.slane %v106, %v110
    %v112 = vlaneseq
    %v113 = vshrl.u32 %v112, 7
    %v114 = vsub.s32 1, %v113
    %v115 = vrot.slane %v106, %v114
    %v116 = vlaneseq
    %v117 = vshrl.u32 %v116, 7
    %v118 = vsub.s32 2, %v117
    %v119 = vrot.slane %v106, %v118
    %v120 = vlaneseq
    %v121 = vshrl.u32 %v120, 7
    %v122 = vsub.s32 3, %v121
    %v123 = vrot.slane %v106, %v122
    %vm128 = vcmask 523264
    %v130 = vsel %vm128, %v73, 0
    %132 = vmatprep.subr.mxu0 %v75
    %133 = vmatpush1.msra.mxu0 %v74
    %134 = vmatprep.subr.mxu0 %v79
    %135 = vmatpush1.msra.mxu0 %v78
    %136 = vmatprep.subr.mxu0 %v83
    %137 = vmatpush1.msra.mxu0 %v82
    %138 = vmatprep.subr.mxu0 %v87
    %139 = vmatpush1.msra.mxu0 %v86
    %140 = vmatprep.subr.mxu0 %v91
    %141 = vmatpush1.msra.mxu0 %v90
    %142 = vmatprep.subr.mxu0 %v95
    %143 = vmatpush1.msra.mxu0 %v94
    %144 = vmatprep.subr.mxu0 %v99
    %145 = vmatpush1.msra.mxu0 %v98
    %146 = vmatprep.subr.mxu0 %v103
    %147 = vmatpush1.msra.mxu0 %v102
    %148 = vmatprep.subr.mxu0 0.0
    %149 = vmatpush1.msra.mxu0 0.0
    %150 = vmatprep.subr.mxu0 0.0
    %151 = vmatpush1.msra.mxu0 0.0
    %152 = vmatprep.subr.mxu0 0.0
    %153 = vmatpush1.msra.mxu0 0.0
    %154 = vmatprep.subr.mxu0 0.0
    %155 = vmatpush1.msra.mxu0 0.0
    %156 = vmatprep.subr.mxu0 0.0
    %157 = vmatpush1.msra.mxu0 0.0
    %158 = vmatprep.subr.mxu0 0.0
    %159 = vmatpush1.msra.mxu0 0.0
    %160 = vmatprep.subr.mxu0 0.0
    %161 = vmatpush1.msra.mxu0 0.0
    %162 = vmatprep.subr.mxu0 0.0
    %163 = vmatpush1.msra.mxu0 0.0
    %164 = vmatprep.subr.mxu0 0.0
    %165 = vmatpush1.msra.mxu0 0.0
    %166 = vmatprep.subr.mxu0 0.0
    %167 = vmatpush1.msra.mxu0 0.0
    %168 = vmatprep.subr.mxu0 0.0
    %169 = vmatpush1.msra.mxu0 0.0
    %170 = vmatprep.subr.mxu0 0.0
    %171 = vmatpush1.msra.mxu0 0.0
    %172 = vmatprep.subr.mxu0 0.0
    %173 = vmatpush1.msra.mxu0 0.0
    %174 = vmatprep.subr.mxu0 0.0
    %175 = vmatpush1.msra.mxu0 0.0
    %176 = vmatprep.subr.mxu0 0.0
    %177 = vmatpush1.msra.mxu0 0.0
    %178 = vmatprep.subr.mxu0 0.0
    %179 = vmatpush1.msra.mxu0 0.0
    %180 = vmatprep.subr.mxu0 0.0
    %181 = vmatpush1.msra.mxu0 0.0
    %182 = vmatprep.subr.mxu0 0.0
    %183 = vmatpush1.msra.mxu0 0.0
    %184 = vmatprep.subr.mxu0 0.0
    %185 = vmatpush1.msra.mxu0 0.0
    %186 = vmatprep.subr.mxu0 0.0
    %187 = vmatpush1.msra.mxu0 0.0
    %188 = vmatprep.subr.mxu0 0.0
    %189 = vmatpush1.msra.mxu0 0.0
    %190 = vmatprep.subr.mxu0 0.0
    %191 = vmatpush1.msra.mxu0 0.0
    %192 = vmatprep.subr.mxu0 0.0
    %193 = vmatpush1.msra.mxu0 0.0
    %194 = vmatprep.subr.mxu0 0.0
    %195 = vmatpush1.msra.mxu0 0.0
    %196 = vmatprep.mubr.f32.mxu0 0.0
    %197 = vmatmul.mubr.f32.gmra.mrb[0].mxu0 %v130
    %v198 = vpop.f32.mrb[0].mxu0
    %v199 = vadd.f32 %v111, %v198
    %v200 = vpop.f32.mrb[0].mxu0
    %v201 = vadd.f32 %v115, %v200
    %202 = vdwg.mxu0
    %203 = vmatprep.subr.mxu0 %v77
    %204 = vmatpush1.msra.mxu0 %v76
    %205 = vmatprep.subr.mxu0 %v81
    %206 = vmatpush1.msra.mxu0 %v80
    %207 = vmatprep.subr.mxu0 %v85
    %208 = vmatpush1.msra.mxu0 %v84
    %209 = vmatprep.subr.mxu0 %v89
    %210 = vmatpush1.msra.mxu0 %v88
    %211 = vmatprep.subr.mxu0 %v93
    %212 = vmatpush1.msra.mxu0 %v92
    %213 = vmatprep.subr.mxu0 %v97
    %214 = vmatpush1.msra.mxu0 %v96
    %215 = vmatprep.subr.mxu0 %v101
    %216 = vmatpush1.msra.mxu0 %v100
    %217 = vmatprep.subr.mxu0 %v105
    %218 = vmatpush1.msra.mxu0 %v104
    %219 = vmatprep.subr.mxu0 0.0
    %220 = vmatpush1.msra.mxu0 0.0
    %221 = vmatprep.subr.mxu0 0.0
    %222 = vmatpush1.msra.mxu0 0.0
    %223 = vmatprep.subr.mxu0 0.0
    %224 = vmatpush1.msra.mxu0 0.0
    %225 = vmatprep.subr.mxu0 0.0
    %226 = vmatpush1.msra.mxu0 0.0
    %227 = vmatprep.subr.mxu0 0.0
    %228 = vmatpush1.msra.mxu0 0.0
    %229 = vmatprep.subr.mxu0 0.0
    %230 = vmatpush1.msra.mxu0 0.0
    %231 = vmatprep.subr.mxu0 0.0
    %232 = vmatpush1.msra.mxu0 0.0
    %233 = vmatprep.subr.mxu0 0.0
    %234 = vmatpush1.msra.mxu0 0.0
    %235 = vmatprep.subr.mxu0 0.0
    %236 = vmatpush1.msra.mxu0 0.0
    %237 = vmatprep.subr.mxu0 0.0
    %238 = vmatpush1.msra.mxu0 0.0
    %239 = vmatprep.subr.mxu0 0.0
    %240 = vmatpush1.msra.mxu0 0.0
    %241 = vmatprep.subr.mxu0 0.0
    %242 = vmatpush1.msra.mxu0 0.0
    %243 = vmatprep.subr.mxu0 0.0
    %244 = vmatpush1.msra.mxu0 0.0
    %245 = vmatprep.subr.mxu0 0.0
    %246 = vmatpush1.msra.mxu0 0.0
    %247 = vmatprep.subr.mxu0 0.0
    %248 = vmatpush1.msra.mxu0 0.0
    %249 = vmatprep.subr.mxu0 0.0
    %250 = vmatpush1.msra.mxu0 0.0
    %251 = vmatprep.subr.mxu0 0.0
    %252 = vmatpush1.msra.mxu0 0.0
    %253 = vmatprep.subr.mxu0 0.0
    %254 = vmatpush1.msra.mxu0 0.0
    %255 = vmatprep.subr.mxu0 0.0
    %256 = vmatpush1.msra.mxu0 0.0
    %257 = vmatprep.subr.mxu0 0.0
    %258 = vmatpush1.msra.mxu0 0.0
    %259 = vmatprep.subr.mxu0 0.0
    %260 = vmatpush1.msra.mxu0 0.0
    %261 = vmatprep.subr.mxu0 0.0
    %262 = vmatpush1.msra.mxu0 0.0
    %263 = vmatprep.subr.mxu0 0.0
    %264 = vmatpush1.msra.mxu0 0.0
    %265 = vmatprep.subr.mxu0 0.0
    %266 = vmatpush1.msra.mxu0 0.0
    %267 = vmatprep.mubr.f32.mxu0 0.0
    %268 = vmatmul.mubr.f32.gmra.mrb[0].mxu0 %v130
    %v269 = vpop.f32.mrb[0].mxu0
    %v270 = vadd.f32 %v119, %v269
    %v271 = vpop.f32.mrb[0].mxu0
    %v272 = vadd.f32 %v123, %v271
    %273 = vdwg.mxu0
    %v274 = vmax.f32 %v199, 0.0
    %v275 = vmax.f32 %v201, 0.0
    %v276 = vmax.f32 %v270, 0.0
    %v277 = vmax.f32 %v272, 0.0
    %v278 = vld [vmem:[#allocation2] sm:$0xff]
    %v279 = vld [vmem:[#allocation2 + $0x8] sm:$0xff]
    %v280 = vld [vmem:[#allocation2 + $0x10] sm:$0xff]
    %v281 = vld [vmem:[#allocation2 + $0x18] sm:$0xff]
    %v282 = vld [vmem:[#allocation2 + $0x20] sm:$0xff]
    %v283 = vld [vmem:[#allocation2 + $0x28] sm:$0xff]
    %v284 = vld [vmem:[#allocation2 + $0x30] sm:$0xff]
    %v285 = vld [vmem:[#allocation2 + $0x38] sm:$0xff]
    %v286 = vld [vmem:[#allocation2 + $0x40] sm:$0xff]
    %v287 = vld [vmem:[#allocation2 + $0x48] sm:$0xff]
    %v288 = vld [vmem:[#allocation2 + $0x50] sm:$0xff]
    %v289 = vld [vmem:[#allocation2 + $0x58] sm:$0xff]
    %v290 = vld [vmem:[#allocation2 + $0x60] sm:$0xff]
    %v291 = vld [vmem:[#allocation2 + $0x68] sm:$0xff]
    %v292 = vld [vmem:[#allocation2 + $0x70] sm:$0xff]
    %v293 = vld [vmem:[#allocation2 + $0x78] sm:$0xff]
    %v294 = vld [vmem:[#allocation2 + $0x80] sm:$0xff]
    %v295 = vld [vmem:[#allocation2 + $0x88] sm:$0xff]
    %v296 = vld [vmem:[#allocation2 + $0x90] sm:$0xff]
    %v297 = vld [vmem:[#allocation2 + $0x98] sm:$0xff]
    %v298 = vld [vmem:[#allocation2 + $0xa0] sm:$0xff]
    %v299 = vld [vmem:[#allocation2 + $0xa8] sm:$0xff]
    %v300 = vld [vmem:[#allocation2 + $0xb0] sm:$0xff]
    %v301 = vld [vmem:[#allocation2 + $0xb8] sm:$0xff]
    %v302 = vld [vmem:[#allocation2 + $0xc0] sm:$0xff]
    %v303 = vld [vmem:[#allocation2 + $0xc8] sm:$0xff]
    %v304 = vld [vmem:[#allocation2 + $0xd0] sm:$0xff]
    %v305 = vld [vmem:[#allocation2 + $0xd8] sm:$0xff]
    %v306 = vld [vmem:[#allocation2 + $0xe0] sm:$0xff]
    %v307 = vld [vmem:[#allocation2 + $0xe8] sm:$0xff]
    %v308 = vld [vmem:[#allocation2 + $0xf0] sm:$0xff]
    %v309 = vld [vmem:[#allocation2 + $0xf8] sm:$0xff]
    %v310 = vld [vmem:[#allocation2 + $0x100] sm:$0xff]
    %v311 = vld [vmem:[#allocation2 + $0x108] sm:$0xff]
    %v312 = vld [vmem:[#allocation2 + $0x110] sm:$0xff]
    %v313 = vld [vmem:[#allocation2 + $0x118] sm:$0xff]
    %v314 = vld [vmem:[#allocation2 + $0x120] sm:$0xff]
    %v315 = vld [vmem:[#allocation2 + $0x128] sm:$0xff]
    %v316 = vld [vmem:[#allocation2 + $0x130] sm:$0xff]
    %v317 = vld [vmem:[#allocation2 + $0x138] sm:$0xff]
    %v318 = vld [vmem:[#allocation2 + $0x140] sm:$0xff]
    %v319 = vld [vmem:[#allocation2 + $0x148] sm:$0xff]
    %v320 = vld [vmem:[#allocation2 + $0x150] sm:$0xff]
    %v321 = vld [vmem:[#allocation2 + $0x158] sm:$0xff]
    %v322 = vld [vmem:[#allocation2 + $0x160] sm:$0xff]
    %v323 = vld [vmem:[#allocation2 + $0x168] sm:$0xff]
    %v324 = vld [vmem:[#allocation2 + $0x170] sm:$0xff]
    %v325 = vld [vmem:[#allocation2 + $0x178] sm:$0xff]
    %v326 = vld [vmem:[#allocation2 + $0x180] sm:$0xff]
    %v327 = vld [vmem:[#allocation2 + $0x188] sm:$0xff]
    %v328 = vld [vmem:[#allocation2 + $0x190] sm:$0xff]
    %v329 = vld [vmem:[#allocation2 + $0x198] sm:$0xff]
    %v330 = vld [vmem:[#allocation2 + $0x1a0] sm:$0xff]
    %v331 = vld [vmem:[#allocation2 + $0x1a8] sm:$0xff]
    %v332 = vld [vmem:[#allocation2 + $0x1b0] sm:$0xff]
    %v333 = vld [vmem:[#allocation2 + $0x1b8] sm:$0xff]
    %v334 = vld [vmem:[#allocation2 + $0x1c0] sm:$0xff]
    %v335 = vld [vmem:[#allocation2 + $0x1c8] sm:$0xff]
    %v336 = vld [vmem:[#allocation2 + $0x1d0] sm:$0xff]
    %v337 = vld [vmem:[#allocation2 + $0x1d8] sm:$0xff]
    %v338 = vld [vmem:[#allocation2 + $0x1e0] sm:$0xff]
    %v339 = vld [vmem:[#allocation2 + $0x1e8] sm:$0xff]
    %v340 = vld [vmem:[#allocation2 + $0x1f0] sm:$0xff]
    %v341 = vld [vmem:[#allocation2 + $0x1f8] sm:$0xff]
    %v342 = vld [vmem:[#allocation2 + $0x200] sm:$0xff]
    %v343 = vld [vmem:[#allocation2 + $0x208] sm:$0xff]
    %v344 = vld [vmem:[#allocation2 + $0x210] sm:$0xff]
    %v345 = vld [vmem:[#allocation2 + $0x218] sm:$0xff]
    %v346 = vld [vmem:[#allocation2 + $0x220] sm:$0xff]
    %v347 = vld [vmem:[#allocation2 + $0x228] sm:$0xff]
    %v348 = vld [vmem:[#allocation2 + $0x230] sm:$0xff]
    %v349 = vld [vmem:[#allocation2 + $0x238] sm:$0xff]
    %v350 = vld [vmem:[#allocation2 + $0x240] sm:$0xff]
    %v351 = vld [vmem:[#allocation2 + $0x248] sm:$0xff]
    %v352 = vld [vmem:[#allocation2 + $0x250] sm:$0xff]
    %v353 = vld [vmem:[#allocation2 + $0x258] sm:$0xff]
    %v354 = vld [vmem:[#allocation2 + $0x260] sm:$0xff]
    %v355 = vld [vmem:[#allocation2 + $0x268] sm:$0xff]
    %v356 = vld [vmem:[#allocation2 + $0x270] sm:$0xff]
    %v357 = vld [vmem:[#allocation2 + $0x278] sm:$0xff]
    %v358 = vld [vmem:[#allocation2 + $0x280] sm:$0xff]
    %v359 = vld [vmem:[#allocation2 + $0x288] sm:$0xff]
    %v360 = vld [vmem:[#allocation2 + $0x290] sm:$0xff]
    %v361 = vld [vmem:[#allocation2 + $0x298] sm:$0xff]
    %v362 = vld [vmem:[#allocation2 + $0x2a0] sm:$0xff]
    %v363 = vld [vmem:[#allocation2 + $0x2a8] sm:$0xff]
    %v364 = vld [vmem:[#allocation2 + $0x2b0] sm:$0xff]
    %v365 = vld [vmem:[#allocation2 + $0x2b8] sm:$0xff]
    %v366 = vld [vmem:[#allocation2 + $0x2c0] sm:$0xff]
    %v367 = vld [vmem:[#allocation2 + $0x2c8] sm:$0xff]
    %v368 = vld [vmem:[#allocation2 + $0x2d0] sm:$0xff]
    %v369 = vld [vmem:[#allocation2 + $0x2d8] sm:$0xff]
    %v370 = vld [vmem:[#allocation2 + $0x2e0] sm:$0xff]
    %v371 = vld [vmem:[#allocation2 + $0x2e8] sm:$0xff]
    %v372 = vld [vmem:[#allocation2 + $0x2f0] sm:$0xff]
    %v373 = vld [vmem:[#allocation2 + $0x2f8] sm:$0xff]
    %v374 = vld [vmem:[#allocation2 + $0x300] sm:$0xff]
    %v375 = vld [vmem:[#allocation2 + $0x308] sm:$0xff]
    %v376 = vld [vmem:[#allocation2 + $0x310] sm:$0xff]
    %v377 = vld [vmem:[#allocation2 + $0x318] sm:$0xff]
    %v378 = vld [vmem:[#allocation2 + $0x320] sm:$0xff]
    %v379 = vld [vmem:[#allocation2 + $0x328] sm:$0xff]
    %v380 = vld [vmem:[#allocation2 + $0x330] sm:$0xff]
    %v381 = vld [vmem:[#allocation2 + $0x338] sm:$0xff]
    %v382 = vld [vmem:[#allocation2 + $0x340] sm:$0xff]
    %v383 = vld [vmem:[#allocation2 + $0x348] sm:$0xff]
    %v384 = vld [vmem:[#allocation2 + $0x350] sm:$0xff]
    %v385 = vld [vmem:[#allocation2 + $0x358] sm:$0xff]
    %v386 = vld [vmem:[#allocation2 + $0x360] sm:$0xff]
    %v387 = vld [vmem:[#allocation2 + $0x368] sm:$0xff]
    %v388 = vld [vmem:[#allocation2 + $0x370] sm:$0xff]
    %v389 = vld [vmem:[#allocation2 + $0x378] sm:$0xff]
    %v390 = vld [vmem:[#allocation2 + $0x380] sm:$0xff]
    %v391 = vld [vmem:[#allocation2 + $0x388] sm:$0xff]
    %v392 = vld [vmem:[#allocation2 + $0x390] sm:$0xff]
    %v393 = vld [vmem:[#allocation2 + $0x398] sm:$0xff]
    %v394 = vld [vmem:[#allocation2 + $0x3a0] sm:$0xff]
    %v395 = vld [vmem:[#allocation2 + $0x3a8] sm:$0xff]
    %v396 = vld [vmem:[#allocation2 + $0x3b0] sm:$0xff]
    %v397 = vld [vmem:[#allocation2 + $0x3b8] sm:$0xff]
    %v398 = vld [vmem:[#allocation2 + $0x3c0] sm:$0xff]
    %v399 = vld [vmem:[#allocation2 + $0x3c8] sm:$0xff]
    %v400 = vld [vmem:[#allocation2 + $0x3d0] sm:$0xff]
    %v401 = vld [vmem:[#allocation2 + $0x3d8] sm:$0xff]
    %v402 = vld [vmem:[#allocation2 + $0x3e0] sm:$0xff]
    %v403 = vld [vmem:[#allocation2 + $0x3e8] sm:$0xff]
    %v404 = vld [vmem:[#allocation2 + $0x3f0] sm:$0xff]
    %v405 = vld [vmem:[#allocation2 + $0x3f8] sm:$0xff]
    %v406 = vld [vmem:[#allocation2 + $0x400] sm:$0xff]
    %v407 = vld [vmem:[#allocation2 + $0x408] sm:$0xff]
    %v408 = vld [vmem:[#allocation2 + $0x410] sm:$0xff]
    %v409 = vld [vmem:[#allocation2 + $0x418] sm:$0xff]
    %v410 = vld [vmem:[#allocation2 + $0x420] sm:$0xff]
    %v411 = vld [vmem:[#allocation2 + $0x428] sm:$0xff]
    %v412 = vld [vmem:[#allocation2 + $0x430] sm:$0xff]
    %v413 = vld [vmem:[#allocation2 + $0x438] sm:$0xff]
    %v414 = vld [vmem:[#allocation2 + $0x440] sm:$0xff]
    %v415 = vld [vmem:[#allocation2 + $0x448] sm:$0xff]
    %v416 = vld [vmem:[#allocation2 + $0x450] sm:$0xff]
    %v417 = vld [vmem:[#allocation2 + $0x458] sm:$0xff]
    %v418 = vld [vmem:[#allocation2 + $0x460] sm:$0xff]
    %v419 = vld [vmem:[#allocation2 + $0x468] sm:$0xff]
    %v420 = vld [vmem:[#allocation2 + $0x470] sm:$0xff]
    %v421 = vld [vmem:[#allocation2 + $0x478] sm:$0xff]
    %v422 = vld [vmem:[#allocation2 + $0x480] sm:$0xff]
    %v423 = vld [vmem:[#allocation2 + $0x488] sm:$0xff]
    %v424 = vld [vmem:[#allocation2 + $0x490] sm:$0xff]
    %v425 = vld [vmem:[#allocation2 + $0x498] sm:$0xff]
    %v426 = vld [vmem:[#allocation2 + $0x4a0] sm:$0xff]
    %v427 = vld [vmem:[#allocation2 + $0x4a8] sm:$0xff]
    %v428 = vld [vmem:[#allocation2 + $0x4b0] sm:$0xff]
    %v429 = vld [vmem:[#allocation2 + $0x4b8] sm:$0xff]
    %v430 = vld [vmem:[#allocation2 + $0x4c0] sm:$0xff]
    %v431 = vld [vmem:[#allocation2 + $0x4c8] sm:$0xff]
    %v432 = vld [vmem:[#allocation2 + $0x4d0] sm:$0xff]
    %v433 = vld [vmem:[#allocation2 + $0x4d8] sm:$0xff]
    %v434 = vld [vmem:[#allocation2 + $0x4e0] sm:$0xff]
    %v435 = vld [vmem:[#allocation2 + $0x4e8] sm:$0xff]
    %v436 = vld [vmem:[#allocation2 + $0x4f0] sm:$0xff]
    %v437 = vld [vmem:[#allocation2 + $0x4f8] sm:$0xff]
    %v438 = vld [vmem:[#allocation2 + $0x500] sm:$0xff]
    %v439 = vld [vmem:[#allocation2 + $0x508] sm:$0xff]
    %v440 = vld [vmem:[#allocation2 + $0x510] sm:$0xff]
    %v441 = vld [vmem:[#allocation2 + $0x518] sm:$0xff]
    %v442 = vld [vmem:[#allocation2 + $0x520] sm:$0xff]
    %v443 = vld [vmem:[#allocation2 + $0x528] sm:$0xff]
    %v444 = vld [vmem:[#allocation2 + $0x530] sm:$0xff]
    %v445 = vld [vmem:[#allocation2 + $0x538] sm:$0xff]
    %v446 = vld [vmem:[#allocation2 + $0x540] sm:$0xff]
    %v447 = vld [vmem:[#allocation2 + $0x548] sm:$0xff]
    %v448 = vld [vmem:[#allocation2 + $0x550] sm:$0xff]
    %v449 = vld [vmem:[#allocation2 + $0x558] sm:$0xff]
    %v450 = vld [vmem:[#allocation2 + $0x560] sm:$0xff]
    %v451 = vld [vmem:[#allocation2 + $0x568] sm:$0xff]
    %v452 = vld [vmem:[#allocation2 + $0x570] sm:$0xff]
    %v453 = vld [vmem:[#allocation2 + $0x578] sm:$0xff]
    %v454 = vld [vmem:[#allocation2 + $0x580] sm:$0xff]
    %v455 = vld [vmem:[#allocation2 + $0x588] sm:$0xff]
    %v456 = vld [vmem:[#allocation2 + $0x590] sm:$0xff]
    %v457 = vld [vmem:[#allocation2 + $0x598] sm:$0xff]
    %v458 = vld [vmem:[#allocation2 + $0x5a0] sm:$0xff]
    %v459 = vld [vmem:[#allocation2 + $0x5a8] sm:$0xff]
    %v460 = vld [vmem:[#allocation2 + $0x5b0] sm:$0xff]
    %v461 = vld [vmem:[#allocation2 + $0x5b8] sm:$0xff]
    %v462 = vld [vmem:[#allocation2 + $0x5c0] sm:$0xff]
    %v463 = vld [vmem:[#allocation2 + $0x5c8] sm:$0xff]
    %v464 = vld [vmem:[#allocation2 + $0x5d0] sm:$0xff]
    %v465 = vld [vmem:[#allocation2 + $0x5d8] sm:$0xff]
    %v466 = vld [vmem:[#allocation2 + $0x5e0] sm:$0xff]
    %v467 = vld [vmem:[#allocation2 + $0x5e8] sm:$0xff]
    %v468 = vld [vmem:[#allocation2 + $0x5f0] sm:$0xff]
    %v469 = vld [vmem:[#allocation2 + $0x5f8] sm:$0xff]
    %v470 = vld [vmem:[#allocation2 + $0x600] sm:$0xff]
    %v471 = vld [vmem:[#allocation2 + $0x608] sm:$0xff]
    %v472 = vld [vmem:[#allocation2 + $0x610] sm:$0xff]
    %v473 = vld [vmem:[#allocation2 + $0x618] sm:$0xff]
    %v474 = vld [vmem:[#allocation2 + $0x620] sm:$0xff]
    %v475 = vld [vmem:[#allocation2 + $0x628] sm:$0xff]
    %v476 = vld [vmem:[#allocation2 + $0x630] sm:$0xff]
    %v477 = vld [vmem:[#allocation2 + $0x638] sm:$0xff]
    %v478 = vld [vmem:[#allocation2 + $0x640] sm:$0xff]
    %v479 = vld [vmem:[#allocation2 + $0x648] sm:$0xff]
    %v480 = vld [vmem:[#allocation2 + $0x650] sm:$0xff]
    %v481 = vld [vmem:[#allocation2 + $0x658] sm:$0xff]
    %v482 = vld [vmem:[#allocation2 + $0x660] sm:$0xff]
    %v483 = vld [vmem:[#allocation2 + $0x668] sm:$0xff]
    %v484 = vld [vmem:[#allocation2 + $0x670] sm:$0xff]
    %v485 = vld [vmem:[#allocation2 + $0x678] sm:$0xff]
    %v486 = vld [vmem:[#allocation2 + $0x680] sm:$0xff]
    %v487 = vld [vmem:[#allocation2 + $0x688] sm:$0xff]
    %v488 = vld [vmem:[#allocation2 + $0x690] sm:$0xff]
    %v489 = vld [vmem:[#allocation2 + $0x698] sm:$0xff]
    %v490 = vld [vmem:[#allocation2 + $0x6a0] sm:$0xff]
    %v491 = vld [vmem:[#allocation2 + $0x6a8] sm:$0xff]
    %v492 = vld [vmem:[#allocation2 + $0x6b0] sm:$0xff]
    %v493 = vld [vmem:[#allocation2 + $0x6b8] sm:$0xff]
    %v494 = vld [vmem:[#allocation2 + $0x6c0] sm:$0xff]
    %v495 = vld [vmem:[#allocation2 + $0x6c8] sm:$0xff]
    %v496 = vld [vmem:[#allocation2 + $0x6d0] sm:$0xff]
    %v497 = vld [vmem:[#allocation2 + $0x6d8] sm:$0xff]
    %v498 = vld [vmem:[#allocation2 + $0x6e0] sm:$0xff]
    %v499 = vld [vmem:[#allocation2 + $0x6e8] sm:$0xff]
    %v500 = vld [vmem:[#allocation2 + $0x6f0] sm:$0xff]
    %v501 = vld [vmem:[#allocation2 + $0x6f8] sm:$0xff]
    %v502 = vld [vmem:[#allocation2 + $0x700] sm:$0xff]
    %v503 = vld [vmem:[#allocation2 + $0x708] sm:$0xff]
    %v504 = vld [vmem:[#allocation2 + $0x710] sm:$0xff]
    %v505 = vld [vmem:[#allocation2 + $0x718] sm:$0xff]
    %v506 = vld [vmem:[#allocation2 + $0x720] sm:$0xff]
    %v507 = vld [vmem:[#allocation2 + $0x728] sm:$0xff]
    %v508 = vld [vmem:[#allocation2 + $0x730] sm:$0xff]
    %v509 = vld [vmem:[#allocation2 + $0x738] sm:$0xff]
    %v510 = vld [vmem:[#allocation2 + $0x740] sm:$0xff]
    %v511 = vld [vmem:[#allocation2 + $0x748] sm:$0xff]
    %v512 = vld [vmem:[#allocation2 + $0x750] sm:$0xff]
    %v513 = vld [vmem:[#allocation2 + $0x758] sm:$0xff]
    %v514 = vld [vmem:[#allocation2 + $0x760] sm:$0xff]
    %v515 = vld [vmem:[#allocation2 + $0x768] sm:$0xff]
    %v516 = vld [vmem:[#allocation2 + $0x770] sm:$0xff]
    %v517 = vld [vmem:[#allocation2 + $0x778] sm:$0xff]
    %v518 = vld [vmem:[#allocation2 + $0x780] sm:$0xff]
    %v519 = vld [vmem:[#allocation2 + $0x788] sm:$0xff]
    %v520 = vld [vmem:[#allocation2 + $0x790] sm:$0xff]
    %v521 = vld [vmem:[#allocation2 + $0x798] sm:$0xff]
    %v522 = vld [vmem:[#allocation2 + $0x7a0] sm:$0xff]
    %v523 = vld [vmem:[#allocation2 + $0x7a8] sm:$0xff]
    %v524 = vld [vmem:[#allocation2 + $0x7b0] sm:$0xff]
    %v525 = vld [vmem:[#allocation2 + $0x7b8] sm:$0xff]
    %v526 = vld [vmem:[#allocation2 + $0x7c0] sm:$0xff]
    %v527 = vld [vmem:[#allocation2 + $0x7c8] sm:$0xff]
    %v528 = vld [vmem:[#allocation2 + $0x7d0] sm:$0xff]
    %v529 = vld [vmem:[#allocation2 + $0x7d8] sm:$0xff]
    %v530 = vld [vmem:[#allocation2 + $0x7e0] sm:$0xff]
    %v531 = vld [vmem:[#allocation2 + $0x7e8] sm:$0xff]
    %v532 = vld [vmem:[#allocation2 + $0x7f0] sm:$0xff]
    %v533 = vld [vmem:[#allocation2 + $0x7f8] sm:$0xff]
    %v534 = vld [vmem:[%s5] sm:$0xf]
    %v536 = vlaneseq
    %v537 = vshrl.u32 %v536, 7
    %v538 = vsub.s32 0, %v537
    %v539 = vrot.slane %v534, %v538
    %v540 = vlaneseq
    %v541 = vshrl.u32 %v540, 7
    %v542 = vsub.s32 1, %v541
    %v543 = vrot.slane %v534, %v542
    %v544 = vlaneseq
    %v545 = vshrl.u32 %v544, 7
    %v546 = vsub.s32 2, %v545
    %v547 = vrot.slane %v534, %v546
    %v548 = vlaneseq
    %v549 = vshrl.u32 %v548, 7
    %v550 = vsub.s32 3, %v549
    %v551 = vrot.slane %v534, %v550
    %556 = vmatprep.subr.mxu0 %v279
    %557 = vmatpush1.msra.mxu0 %v278
    %558 = vmatprep.subr.mxu0 %v283
    %559 = vmatpush1.msra.mxu0 %v282
    %560 = vmatprep.subr.mxu0 %v287
    %561 = vmatpush1.msra.mxu0 %v286
    %562 = vmatprep.subr.mxu0 %v291
    %563 = vmatpush1.msra.mxu0 %v290
    %564 = vmatprep.subr.mxu0 %v295
    %565 = vmatpush1.msra.mxu0 %v294
    %566 = vmatprep.subr.mxu0 %v299
    %567 = vmatpush1.msra.mxu0 %v298
    %568 = vmatprep.subr.mxu0 %v303
    %569 = vmatpush1.msra.mxu0 %v302
    %570 = vmatprep.subr.mxu0 %v307
    %571 = vmatpush1.msra.mxu0 %v306
    %572 = vmatprep.subr.mxu0 %v311
    %573 = vmatpush1.msra.mxu0 %v310
    %574 = vmatprep.subr.mxu0 %v315
    %575 = vmatpush1.msra.mxu0 %v314
    %576 = vmatprep.subr.mxu0 %v319
    %577 = vmatpush1.msra.mxu0 %v318
    %578 = vmatprep.subr.mxu0 %v323
    %579 = vmatpush1.msra.mxu0 %v322
    %580 = vmatprep.subr.mxu0 %v327
    %581 = vmatpush1.msra.mxu0 %v326
    %582 = vmatprep.subr.mxu0 %v331
    %583 = vmatpush1.msra.mxu0 %v330
    %584 = vmatprep.subr.mxu0 %v335
    %585 = vmatpush1.msra.mxu0 %v334
    %586 = vmatprep.subr.mxu0 %v339
    %587 = vmatpush1.msra.mxu0 %v338
    %588 = vmatprep.subr.mxu0 %v343
    %589 = vmatpush1.msra.mxu0 %v342
    %590 = vmatprep.subr.mxu0 %v347
    %591 = vmatpush1.msra.mxu0 %v346
    %592 = vmatprep.subr.mxu0 %v351
    %593 = vmatpush1.msra.mxu0 %v350
    %594 = vmatprep.subr.mxu0 %v355
    %595 = vmatpush1.msra.mxu0 %v354
    %596 = vmatprep.subr.mxu0 %v359
    %597 = vmatpush1.msra.mxu0 %v358
    %598 = vmatprep.subr.mxu0 %v363
    %599 = vmatpush1.msra.mxu0 %v362
    %600 = vmatprep.subr.mxu0 %v367
    %601 = vmatpush1.msra.mxu0 %v366
    %602 = vmatprep.subr.mxu0 %v371
    %603 = vmatpush1.msra.mxu0 %v370
    %604 = vmatprep.subr.mxu0 %v375
    %605 = vmatpush1.msra.mxu0 %v374
    %606 = vmatprep.subr.mxu0 %v379
    %607 = vmatpush1.msra.mxu0 %v378
    %608 = vmatprep.subr.mxu0 %v383
    %609 = vmatpush1.msra.mxu0 %v382
    %610 = vmatprep.subr.mxu0 %v387
    %611 = vmatpush1.msra.mxu0 %v386
    %612 = vmatprep.subr.mxu0 %v391
    %613 = vmatpush1.msra.mxu0 %v390
    %614 = vmatprep.subr.mxu0 %v395
    %615 = vmatpush1.msra.mxu0 %v394
    %616 = vmatprep.subr.mxu0 %v399
    %617 = vmatpush1.msra.mxu0 %v398
    %618 = vmatprep.subr.mxu0 %v403
    %619 = vmatpush1.msra.mxu0 %v402
    %620 = vmatprep.mubr.f32.mxu0 %v275
    %621 = vmatmul.mubr.f32.gmra.mrb[0].mxu0 %v274
    %v622 = vpop.f32.mrb[0].mxu0
    %v623 = vadd.f32 %v539, %v622
    %v624 = vpop.f32.mrb[0].mxu0
    %v625 = vadd.f32 %v543, %v624
    %626 = vdwg.mxu0
    %627 = vmatprep.subr.mxu0 %v407
    %628 = vmatpush1.msra.mxu0 %v406
    %629 = vmatprep.subr.mxu0 %v411
    %630 = vmatpush1.msra.mxu0 %v410
    %631 = vmatprep.subr.mxu0 %v415
    %632 = vmatpush1.msra.mxu0 %v414
    %633 = vmatprep.subr.mxu0 %v419
    %634 = vmatpush1.msra.mxu0 %v418
    %635 = vmatprep.subr.mxu0 %v423
    %636 = vmatpush1.msra.mxu0 %v422
    %637 = vmatprep.subr.mxu0 %v427
    %638 = vmatpush1.msra.mxu0 %v426
    %639 = vmatprep.subr.mxu0 %v431
    %640 = vmatpush1.msra.mxu0 %v430
    %641 = vmatprep.subr.mxu0 %v435
    %642 = vmatpush1.msra.mxu0 %v434
    %643 = vmatprep.subr.mxu0 %v439
    %644 = vmatpush1.msra.mxu0 %v438
    %645 = vmatprep.subr.mxu0 %v443
    %646 = vmatpush1.msra.mxu0 %v442
    %647 = vmatprep.subr.mxu0 %v447
    %648 = vmatpush1.msra.mxu0 %v446
    %649 = vmatprep.subr.mxu0 %v451
    %650 = vmatpush1.msra.mxu0 %v450
    %651 = vmatprep.subr.mxu0 %v455
    %652 = vmatpush1.msra.mxu0 %v454
    %653 = vmatprep.subr.mxu0 %v459
    %654 = vmatpush1.msra.mxu0 %v458
    %655 = vmatprep.subr.mxu0 %v463
    %656 = vmatpush1.msra.mxu0 %v462
    %657 = vmatprep.subr.mxu0 %v467
    %658 = vmatpush1.msra.mxu0 %v466
    %659 = vmatprep.subr.mxu0 %v471
    %660 = vmatpush1.msra.mxu0 %v470
    %661 = vmatprep.subr.mxu0 %v475
    %662 = vmatpush1.msra.mxu0 %v474
    %663 = vmatprep.subr.mxu0 %v479
    %664 = vmatpush1.msra.mxu0 %v478
    %665 = vmatprep.subr.mxu0 %v483
    %666 = vmatpush1.msra.mxu0 %v482
    %667 = vmatprep.subr.mxu0 %v487
    %668 = vmatpush1.msra.mxu0 %v486
    %669 = vmatprep.subr.mxu0 %v491
    %670 = vmatpush1.msra.mxu0 %v490
    %671 = vmatprep.subr.mxu0 %v495
    %672 = vmatpush1.msra.mxu0 %v494
    %673 = vmatprep.subr.mxu0 %v499
    %674 = vmatpush1.msra.mxu0 %v498
    %675 = vmatprep.subr.mxu0 %v503
    %676 = vmatpush1.msra.mxu0 %v502
    %677 = vmatprep.subr.mxu0 %v507
    %678 = vmatpush1.msra.mxu0 %v506
    %679 = vmatprep.subr.mxu0 %v511
    %680 = vmatpush1.msra.mxu0 %v510
    %681 = vmatprep.subr.mxu0 %v515
    %682 = vmatpush1.msra.mxu0 %v514
    %683 = vmatprep.subr.mxu0 %v519
    %684 = vmatpush1.msra.mxu0 %v518
    %685 = vmatprep.subr.mxu0 %v523
    %686 = vmatpush1.msra.mxu0 %v522
    %687 = vmatprep.subr.mxu0 %v527
    %688 = vmatpush1.msra.mxu0 %v526
    %689 = vmatprep.subr.mxu0 %v531
    %690 = vmatpush1.msra.mxu0 %v530
    %691 = vmatprep.mubr.f32.mxu0 %v277
    %692 = vmatmul.mubr.f32.gmra.mrb[0].mxu0 %v276
    %v693 = vpop.f32.mrb[0].mxu0
    %v694 = vadd.f32 %v623, %v693
    %v695 = vpop.f32.mrb[0].mxu0
    %v696 = vadd.f32 %v625, %v695
    %697 = vdwg.mxu0
    %698 = vmatprep.subr.mxu0 %v281
    %699 = vmatpush1.msra.mxu0 %v280
    %700 = vmatprep.subr.mxu0 %v285
    %701 = vmatpush1.msra.mxu0 %v284
    %702 = vmatprep.subr.mxu0 %v289
    %703 = vmatpush1.msra.mxu0 %v288
    %704 = vmatprep.subr.mxu0 %v293
    %705 = vmatpush1.msra.mxu0 %v292
    %706 = vmatprep.subr.mxu0 %v297
    %707 = vmatpush1.msra.mxu0 %v296
    %708 = vmatprep.subr.mxu0 %v301
    %709 = vmatpush1.msra.mxu0 %v300
    %710 = vmatprep.subr.mxu0 %v305
    %711 = vmatpush1.msra.mxu0 %v304
    %712 = vmatprep.subr.mxu0 %v309
    %713 = vmatpush1.msra.mxu0 %v308
    %714 = vmatprep.subr.mxu0 %v313
    %715 = vmatpush1.msra.mxu0 %v312
    %716 = vmatprep.subr.mxu0 %v317
    %717 = vmatpush1.msra.mxu0 %v316
    %718 = vmatprep.subr.mxu0 %v321
    %719 = vmatpush1.msra.mxu0 %v320
    %720 = vmatprep.subr.mxu0 %v325
    %721 = vmatpush1.msra.mxu0 %v324
    %722 = vmatprep.subr.mxu0 %v329
    %723 = vmatpush1.msra.mxu0 %v328
    %724 = vmatprep.subr.mxu0 %v333
    %725 = vmatpush1.msra.mxu0 %v332
    %726 = vmatprep.subr.mxu0 %v337
    %727 = vmatpush1.msra.mxu0 %v336
    %728 = vmatprep.subr.mxu0 %v341
    %729 = vmatpush1.msra.mxu0 %v340
    %730 = vmatprep.subr.mxu0 %v345
    %731 = vmatpush1.msra.mxu0 %v344
    %732 = vmatprep.subr.mxu0 %v349
    %733 = vmatpush1.msra.mxu0 %v348
    %734 = vmatprep.subr.mxu0 %v353
    %735 = vmatpush1.msra.mxu0 %v352
    %736 = vmatprep.subr.mxu0 %v357
    %737 = vmatpush1.msra.mxu0 %v356
    %738 = vmatprep.subr.mxu0 %v361
    %739 = vmatpush1.msra.mxu0 %v360
    %740 = vmatprep.subr.mxu0 %v365
    %741 = vmatpush1.msra.mxu0 %v364
    %742 = vmatprep.subr.mxu0 %v369
    %743 = vmatpush1.msra.mxu0 %v368
    %744 = vmatprep.subr.mxu0 %v373
    %745 = vmatpush1.msra.mxu0 %v372
    %746 = vmatprep.subr.mxu0 %v377
    %747 = vmatpush1.msra.mxu0 %v376
    %748 = vmatprep.subr.mxu0 %v381
    %749 = vmatpush1.msra.mxu0 %v380
    %750 = vmatprep.subr.mxu0 %v385
    %751 = vmatpush1.msra.mxu0 %v384
    %752 = vmatprep.subr.mxu0 %v389
    %753 = vmatpush1.msra.mxu0 %v388
    %754 = vmatprep.subr.mxu0 %v393
    %755 = vmatpush1.msra.mxu0 %v392
    %756 = vmatprep.subr.mxu0 %v397
    %757 = vmatpush1.msra.mxu0 %v396
    %758 = vmatprep.subr.mxu0 %v401
    %759 = vmatpush1.msra.mxu0 %v400
    %760 = vmatprep.subr.mxu0 %v405
    %761 = vmatpush1.msra.mxu0 %v404
    %762 = vmatprep.mubr.f32.mxu0 %v275
    %763 = vmatmul.mubr.f32.gmra.mrb[0].mxu0 %v274
    %v764 = vpop.f32.mrb[0].mxu0
    %v765 = vadd.f32 %v547, %v764
    %v766 = vpop.f32.mrb[0].mxu0
    %v767 = vadd.f32 %v551, %v766
    %768 = vdwg.mxu0
    %769 = vmatprep.subr.mxu0 %v409
    %770 = vmatpush1.msra.mxu0 %v408
    %771 = vmatprep.subr.mxu0 %v413
    %772 = vmatpush1.msra.mxu0 %v412
    %773 = vmatprep.subr.mxu0 %v417
    %774 = vmatpush1.msra.mxu0 %v416
    %775 = vmatprep.subr.mxu0 %v421
    %776 = vmatpush1.msra.mxu0 %v420
    %777 = vmatprep.subr.mxu0 %v425
    %778 = vmatpush1.msra.mxu0 %v424
    %779 = vmatprep.subr.mxu0 %v429
    %780 = vmatpush1.msra.mxu0 %v428
    %781 = vmatprep.subr.mxu0 %v433
    %782 = vmatpush1.msra.mxu0 %v432
    %783 = vmatprep.subr.mxu0 %v437
    %784 = vmatpush1.msra.mxu0 %v436
    %785 = vmatprep.subr.mxu0 %v441
    %786 = vmatpush1.msra.mxu0 %v440
    %787 = vmatprep.subr.mxu0 %v445
    %788 = vmatpush1.msra.mxu0 %v444
    %789 = vmatprep.subr.mxu0 %v449
    %790 = vmatpush1.msra.mxu0 %v448
    %791 = vmatprep.subr.mxu0 %v453
    %792 = vmatpush1.msra.mxu0 %v452
    %793 = vmatprep.subr.mxu0 %v457
    %794 = vmatpush1.msra.mxu0 %v456
    %795 = vmatprep.subr.mxu0 %v461
    %796 = vmatpush1.msra.mxu0 %v460
    %797 = vmatprep.subr.mxu0 %v465
    %798 = vmatpush1.msra.mxu0 %v464
    %799 = vmatprep.subr.mxu0 %v469
    %800 = vmatpush1.msra.mxu0 %v468
    %801 = vmatprep.subr.mxu0 %v473
    %802 = vmatpush1.msra.mxu0 %v472
    %803 = vmatprep.subr.mxu0 %v477
    %804 = vmatpush1.msra.mxu0 %v476
    %805 = vmatprep.subr.mxu0 %v481
    %806 = vmatpush1.msra.mxu0 %v480
    %807 = vmatprep.subr.mxu0 %v485
    %808 = vmatpush1.msra.mxu0 %v484
    %809 = vmatprep.subr.mxu0 %v489
    %810 = vmatpush1.msra.mxu0 %v488
    %811 = vmatprep.subr.mxu0 %v493
    %812 = vmatpush1.msra.mxu0 %v492
    %813 = vmatprep.subr.mxu0 %v497
    %814 = vmatpush1.msra.mxu0 %v496
    %815 = vmatprep.subr.mxu0 %v501
    %816 = vmatpush1.msra.mxu0 %v500
    %817 = vmatprep.subr.mxu0 %v505
    %818 = vmatpush1.msra.mxu0 %v504
    %819 = vmatprep.subr.mxu0 %v509
    %820 = vmatpush1.msra.mxu0 %v508
    %821 = vmatprep.subr.mxu0 %v513
    %822 = vmatpush1.msra.mxu0 %v512
    %823 = vmatprep.subr.mxu0 %v517
    %824 = vmatpush1.msra.mxu0 %v516
    %825 = vmatprep.subr.mxu0 %v521
    %826 = vmatpush1.msra.mxu0 %v520
    %827 = vmatprep.subr.mxu0 %v525
    %828 = vmatpush1.msra.mxu0 %v524
    %829 = vmatprep.subr.mxu0 %v529
    %830 = vmatpush1.msra.mxu0 %v528
    %831 = vmatprep.subr.mxu0 %v533
    %832 = vmatpush1.msra.mxu0 %v532
    %833 = vmatprep.mubr.f32.mxu0 %v277
    %834 = vmatmul.mubr.f32.gmra.mrb[0].mxu0 %v276
    %v835 = vpop.f32.mrb[0].mxu0
    %v836 = vadd.f32 %v765, %v835
    %v837 = vpop.f32.mrb[0].mxu0
    %v838 = vadd.f32 %v767, %v837
    %839 = vdwg.mxu0
    %v840 = vmax.f32 %v694, 0.0
    %v841 = vmax.f32 %v696, 0.0
    %v842 = vmax.f32 %v836, 0.0
    %v843 = vmax.f32 %v838, 0.0
    %v844 = vld [vmem:[#allocation5] sm:$0xff]
    %v845 = vld [vmem:[#allocation5 + $0x8] sm:$0xff]
    %v846 = vld [vmem:[#allocation5 + $0x10] sm:$0xff]
    %v847 = vld [vmem:[#allocation5 + $0x18] sm:$0xff]
    %v848 = vld [vmem:[#allocation5 + $0x20] sm:$0xff]
    %v849 = vld [vmem:[#allocation5 + $0x28] sm:$0xff]
    %v850 = vld [vmem:[#allocation5 + $0x30] sm:$0xff]
    %v851 = vld [vmem:[#allocation5 + $0x38] sm:$0xff]
    %v852 = vld [vmem:[#allocation5 + $0x40] sm:$0xff]
    %v853 = vld [vmem:[#allocation5 + $0x48] sm:$0xff]
    %v854 = vld [vmem:[#allocation5 + $0x50] sm:$0xff]
    %v855 = vld [vmem:[#allocation5 + $0x58] sm:$0xff]
    %v856 = vld [vmem:[#allocation5 + $0x60] sm:$0xff]
    %v857 = vld [vmem:[#allocation5 + $0x68] sm:$0xff]
    %v858 = vld [vmem:[#allocation5 + $0x70] sm:$0xff]
    %v859 = vld [vmem:[#allocation5 + $0x78] sm:$0xff]
    %v860 = vld [vmem:[#allocation5 + $0x80] sm:$0xff]
    %v861 = vld [vmem:[#allocation5 + $0x88] sm:$0xff]
    %v862 = vld [vmem:[#allocation5 + $0x90] sm:$0xff]
    %v863 = vld [vmem:[#allocation5 + $0x98] sm:$0xff]
    %v864 = vld [vmem:[#allocation5 + $0xa0] sm:$0xff]
    %v865 = vld [vmem:[#allocation5 + $0xa8] sm:$0xff]
    %v866 = vld [vmem:[#allocation5 + $0xb0] sm:$0xff]
    %v867 = vld [vmem:[#allocation5 + $0xb8] sm:$0xff]
    %v868 = vld [vmem:[#allocation5 + $0xc0] sm:$0xff]
    %v869 = vld [vmem:[#allocation5 + $0xc8] sm:$0xff]
    %v870 = vld [vmem:[#allocation5 + $0xd0] sm:$0xff]
    %v871 = vld [vmem:[#allocation5 + $0xd8] sm:$0xff]
    %v872 = vld [vmem:[#allocation5 + $0xe0] sm:$0xff]
    %v873 = vld [vmem:[#allocation5 + $0xe8] sm:$0xff]
    %v874 = vld [vmem:[#allocation5 + $0xf0] sm:$0xff]
    %v875 = vld [vmem:[#allocation5 + $0xf8] sm:$0xff]
    %v876 = vld [vmem:[#allocation5 + $0x100] sm:$0xff]
    %v877 = vld [vmem:[#allocation5 + $0x108] sm:$0xff]
    %v878 = vld [vmem:[#allocation5 + $0x110] sm:$0xff]
    %v879 = vld [vmem:[#allocation5 + $0x118] sm:$0xff]
    %v880 = vld [vmem:[#allocation5 + $0x120] sm:$0xff]
    %v881 = vld [vmem:[#allocation5 + $0x128] sm:$0xff]
    %v882 = vld [vmem:[#allocation5 + $0x130] sm:$0xff]
    %v883 = vld [vmem:[#allocation5 + $0x138] sm:$0xff]
    %v884 = vld [vmem:[#allocation5 + $0x140] sm:$0xff]
    %v885 = vld [vmem:[#allocation5 + $0x148] sm:$0xff]
    %v886 = vld [vmem:[#allocation5 + $0x150] sm:$0xff]
    %v887 = vld [vmem:[#allocation5 + $0x158] sm:$0xff]
    %v888 = vld [vmem:[#allocation5 + $0x160] sm:$0xff]
    %v889 = vld [vmem:[#allocation5 + $0x168] sm:$0xff]
    %v890 = vld [vmem:[#allocation5 + $0x170] sm:$0xff]
    %v891 = vld [vmem:[#allocation5 + $0x178] sm:$0xff]
    %v892 = vld [vmem:[#allocation5 + $0x180] sm:$0xff]
    %v893 = vld [vmem:[#allocation5 + $0x188] sm:$0xff]
    %v894 = vld [vmem:[#allocation5 + $0x190] sm:$0xff]
    %v895 = vld [vmem:[#allocation5 + $0x198] sm:$0xff]
    %v896 = vld [vmem:[#allocation5 + $0x1a0] sm:$0xff]
    %v897 = vld [vmem:[#allocation5 + $0x1a8] sm:$0xff]
    %v898 = vld [vmem:[#allocation5 + $0x1b0] sm:$0xff]
    %v899 = vld [vmem:[#allocation5 + $0x1b8] sm:$0xff]
    %v900 = vld [vmem:[#allocation5 + $0x1c0] sm:$0xff]
    %v901 = vld [vmem:[#allocation5 + $0x1c8] sm:$0xff]
    %v902 = vld [vmem:[#allocation5 + $0x1d0] sm:$0xff]
    %v903 = vld [vmem:[#allocation5 + $0x1d8] sm:$0xff]
    %v904 = vld [vmem:[#allocation5 + $0x1e0] sm:$0xff]
    %v905 = vld [vmem:[#allocation5 + $0x1e8] sm:$0xff]
    %v906 = vld [vmem:[#allocation5 + $0x1f0] sm:$0xff]
    %v907 = vld [vmem:[#allocation5 + $0x1f8] sm:$0xff]
    %v908 = vld [vmem:[#allocation5 + $0x200] sm:$0xff]
    %v909 = vld [vmem:[#allocation5 + $0x208] sm:$0xff]
    %v910 = vld [vmem:[#allocation5 + $0x210] sm:$0xff]
    %v911 = vld [vmem:[#allocation5 + $0x218] sm:$0xff]
    %v912 = vld [vmem:[#allocation5 + $0x220] sm:$0xff]
    %v913 = vld [vmem:[#allocation5 + $0x228] sm:$0xff]
    %v914 = vld [vmem:[#allocation5 + $0x230] sm:$0xff]
    %v915 = vld [vmem:[#allocation5 + $0x238] sm:$0xff]
    %v916 = vld [vmem:[#allocation5 + $0x240] sm:$0xff]
    %v917 = vld [vmem:[#allocation5 + $0x248] sm:$0xff]
    %v918 = vld [vmem:[#allocation5 + $0x250] sm:$0xff]
    %v919 = vld [vmem:[#allocation5 + $0x258] sm:$0xff]
    %v920 = vld [vmem:[#allocation5 + $0x260] sm:$0xff]
    %v921 = vld [vmem:[#allocation5 + $0x268] sm:$0xff]
    %v922 = vld [vmem:[#allocation5 + $0x270] sm:$0xff]
    %v923 = vld [vmem:[#allocation5 + $0x278] sm:$0xff]
    %v924 = vld [vmem:[#allocation5 + $0x280] sm:$0xff]
    %v925 = vld [vmem:[#allocation5 + $0x288] sm:$0xff]
    %v926 = vld [vmem:[#allocation5 + $0x290] sm:$0xff]
    %v927 = vld [vmem:[#allocation5 + $0x298] sm:$0xff]
    %v928 = vld [vmem:[#allocation5 + $0x2a0] sm:$0xff]
    %v929 = vld [vmem:[#allocation5 + $0x2a8] sm:$0xff]
    %v930 = vld [vmem:[#allocation5 + $0x2b0] sm:$0xff]
    %v931 = vld [vmem:[#allocation5 + $0x2b8] sm:$0xff]
    %v932 = vld [vmem:[#allocation5 + $0x2c0] sm:$0xff]
    %v933 = vld [vmem:[#allocation5 + $0x2c8] sm:$0xff]
    %v934 = vld [vmem:[#allocation5 + $0x2d0] sm:$0xff]
    %v935 = vld [vmem:[#allocation5 + $0x2d8] sm:$0xff]
    %v936 = vld [vmem:[#allocation5 + $0x2e0] sm:$0xff]
    %v937 = vld [vmem:[#allocation5 + $0x2e8] sm:$0xff]
    %v938 = vld [vmem:[#allocation5 + $0x2f0] sm:$0xff]
    %v939 = vld [vmem:[#allocation5 + $0x2f8] sm:$0xff]
    %v940 = vld [vmem:[#allocation5 + $0x300] sm:$0xff]
    %v941 = vld [vmem:[#allocation5 + $0x308] sm:$0xff]
    %v942 = vld [vmem:[#allocation5 + $0x310] sm:$0xff]
    %v943 = vld [vmem:[#allocation5 + $0x318] sm:$0xff]
    %v944 = vld [vmem:[#allocation5 + $0x320] sm:$0xff]
    %v945 = vld [vmem:[#allocation5 + $0x328] sm:$0xff]
    %v946 = vld [vmem:[#allocation5 + $0x330] sm:$0xff]
    %v947 = vld [vmem:[#allocation5 + $0x338] sm:$0xff]
    %v948 = vld [vmem:[#allocation5 + $0x340] sm:$0xff]
    %v949 = vld [vmem:[#allocation5 + $0x348] sm:$0xff]
    %v950 = vld [vmem:[#allocation5 + $0x350] sm:$0xff]
    %v951 = vld [vmem:[#allocation5 + $0x358] sm:$0xff]
    %v952 = vld [vmem:[#allocation5 + $0x360] sm:$0xff]
    %v953 = vld [vmem:[#allocation5 + $0x368] sm:$0xff]
    %v954 = vld [vmem:[#allocation5 + $0x370] sm:$0xff]
    %v955 = vld [vmem:[#allocation5 + $0x378] sm:$0xff]
    %v956 = vld [vmem:[#allocation5 + $0x380] sm:$0xff]
    %v957 = vld [vmem:[#allocation5 + $0x388] sm:$0xff]
    %v958 = vld [vmem:[#allocation5 + $0x390] sm:$0xff]
    %v959 = vld [vmem:[#allocation5 + $0x398] sm:$0xff]
    %v960 = vld [vmem:[#allocation5 + $0x3a0] sm:$0xff]
    %v961 = vld [vmem:[#allocation5 + $0x3a8] sm:$0xff]
    %v962 = vld [vmem:[#allocation5 + $0x3b0] sm:$0xff]
    %v963 = vld [vmem:[#allocation5 + $0x3b8] sm:$0xff]
    %v964 = vld [vmem:[#allocation5 + $0x3c0] sm:$0xff]
    %v965 = vld [vmem:[#allocation5 + $0x3c8] sm:$0xff]
    %v966 = vld [vmem:[#allocation5 + $0x3d0] sm:$0xff]
    %v967 = vld [vmem:[#allocation5 + $0x3d8] sm:$0xff]
    %v968 = vld [vmem:[#allocation5 + $0x3e0] sm:$0xff]
    %v969 = vld [vmem:[#allocation5 + $0x3e8] sm:$0xff]
    %v970 = vld [vmem:[#allocation5 + $0x3f0] sm:$0xff]
    %v971 = vld [vmem:[#allocation5 + $0x3f8] sm:$0xff]
    %v972 = vld [vmem:[#allocation5 + $0x400] sm:$0xff]
    %v973 = vld [vmem:[#allocation5 + $0x408] sm:$0xff]
    %v974 = vld [vmem:[#allocation5 + $0x410] sm:$0xff]
    %v975 = vld [vmem:[#allocation5 + $0x418] sm:$0xff]
    %v976 = vld [vmem:[#allocation5 + $0x420] sm:$0xff]
    %v977 = vld [vmem:[#allocation5 + $0x428] sm:$0xff]
    %v978 = vld [vmem:[#allocation5 + $0x430] sm:$0xff]
    %v979 = vld [vmem:[#allocation5 + $0x438] sm:$0xff]
    %v980 = vld [vmem:[#allocation5 + $0x440] sm:$0xff]
    %v981 = vld [vmem:[#allocation5 + $0x448] sm:$0xff]
    %v982 = vld [vmem:[#allocation5 + $0x450] sm:$0xff]
    %v983 = vld [vmem:[#allocation5 + $0x458] sm:$0xff]
    %v984 = vld [vmem:[#allocation5 + $0x460] sm:$0xff]
    %v985 = vld [vmem:[#allocation5 + $0x468] sm:$0xff]
    %v986 = vld [vmem:[#allocation5 + $0x470] sm:$0xff]
    %v987 = vld [vmem:[#allocation5 + $0x478] sm:$0xff]
    %v988 = vld [vmem:[#allocation5 + $0x480] sm:$0xff]
    %v989 = vld [vmem:[#allocation5 + $0x488] sm:$0xff]
    %v990 = vld [vmem:[#allocation5 + $0x490] sm:$0xff]
    %v991 = vld [vmem:[#allocation5 + $0x498] sm:$0xff]
    %v992 = vld [vmem:[#allocation5 + $0x4a0] sm:$0xff]
    %v993 = vld [vmem:[#allocation5 + $0x4a8] sm:$0xff]
    %v994 = vld [vmem:[#allocation5 + $0x4b0] sm:$0xff]
    %v995 = vld [vmem:[#allocation5 + $0x4b8] sm:$0xff]
    %v996 = vld [vmem:[#allocation5 + $0x4c0] sm:$0xff]
    %v997 = vld [vmem:[#allocation5 + $0x4c8] sm:$0xff]
    %v998 = vld [vmem:[#allocation5 + $0x4d0] sm:$0xff]
    %v999 = vld [vmem:[#allocation5 + $0x4d8] sm:$0xff]
    %v1000 = vld [vmem:[#allocation5 + $0x4e0] sm:$0xff]
    %v1001 = vld [vmem:[#allocation5 + $0x4e8] sm:$0xff]
    %v1002 = vld [vmem:[#allocation5 + $0x4f0] sm:$0xff]
    %v1003 = vld [vmem:[#allocation5 + $0x4f8] sm:$0xff]
    %v1004 = vld [vmem:[#allocation5 + $0x500] sm:$0xff]
    %v1005 = vld [vmem:[#allocation5 + $0x508] sm:$0xff]
    %v1006 = vld [vmem:[#allocation5 + $0x510] sm:$0xff]
    %v1007 = vld [vmem:[#allocation5 + $0x518] sm:$0xff]
    %v1008 = vld [vmem:[#allocation5 + $0x520] sm:$0xff]
    %v1009 = vld [vmem:[#allocation5 + $0x528] sm:$0xff]
    %v1010 = vld [vmem:[#allocation5 + $0x530] sm:$0xff]
    %v1011 = vld [vmem:[#allocation5 + $0x538] sm:$0xff]
    %v1012 = vld [vmem:[#allocation5 + $0x540] sm:$0xff]
    %v1013 = vld [vmem:[#allocation5 + $0x548] sm:$0xff]
    %v1014 = vld [vmem:[#allocation5 + $0x550] sm:$0xff]
    %v1015 = vld [vmem:[#allocation5 + $0x558] sm:$0xff]
    %v1016 = vld [vmem:[#allocation5 + $0x560] sm:$0xff]
    %v1017 = vld [vmem:[#allocation5 + $0x568] sm:$0xff]
    %v1018 = vld [vmem:[#allocation5 + $0x570] sm:$0xff]
    %v1019 = vld [vmem:[#allocation5 + $0x578] sm:$0xff]
    %v1020 = vld [vmem:[#allocation5 + $0x580] sm:$0xff]
    %v1021 = vld [vmem:[#allocation5 + $0x588] sm:$0xff]
    %v1022 = vld [vmem:[#allocation5 + $0x590] sm:$0xff]
    %v1023 = vld [vmem:[#allocation5 + $0x598] sm:$0xff]
    %v1024 = vld [vmem:[#allocation5 + $0x5a0] sm:$0xff]
    %v1025 = vld [vmem:[#allocation5 + $0x5a8] sm:$0xff]
    %v1026 = vld [vmem:[#allocation5 + $0x5b0] sm:$0xff]
    %v1027 = vld [vmem:[#allocation5 + $0x5b8] sm:$0xff]
    %v1028 = vld [vmem:[#allocation5 + $0x5c0] sm:$0xff]
    %v1029 = vld [vmem:[#allocation5 + $0x5c8] sm:$0xff]
    %v1030 = vld [vmem:[#allocation5 + $0x5d0] sm:$0xff]
    %v1031 = vld [vmem:[#allocation5 + $0x5d8] sm:$0xff]
    %v1032 = vld [vmem:[#allocation5 + $0x5e0] sm:$0xff]
    %v1033 = vld [vmem:[#allocation5 + $0x5e8] sm:$0xff]
    %v1034 = vld [vmem:[#allocation5 + $0x5f0] sm:$0xff]
    %v1035 = vld [vmem:[#allocation5 + $0x5f8] sm:$0xff]
    %v1036 = vld [vmem:[#allocation5 + $0x600] sm:$0xff]
    %v1037 = vld [vmem:[#allocation5 + $0x608] sm:$0xff]
    %v1038 = vld [vmem:[#allocation5 + $0x610] sm:$0xff]
    %v1039 = vld [vmem:[#allocation5 + $0x618] sm:$0xff]
    %v1040 = vld [vmem:[#allocation5 + $0x620] sm:$0xff]
    %v1041 = vld [vmem:[#allocation5 + $0x628] sm:$0xff]
    %v1042 = vld [vmem:[#allocation5 + $0x630] sm:$0xff]
    %v1043 = vld [vmem:[#allocation5 + $0x638] sm:$0xff]
    %v1044 = vld [vmem:[#allocation5 + $0x640] sm:$0xff]
    %v1045 = vld [vmem:[#allocation5 + $0x648] sm:$0xff]
    %v1046 = vld [vmem:[#allocation5 + $0x650] sm:$0xff]
    %v1047 = vld [vmem:[#allocation5 + $0x658] sm:$0xff]
    %v1048 = vld [vmem:[#allocation5 + $0x660] sm:$0xff]
    %v1049 = vld [vmem:[#allocation5 + $0x668] sm:$0xff]
    %v1050 = vld [vmem:[#allocation5 + $0x670] sm:$0xff]
    %v1051 = vld [vmem:[#allocation5 + $0x678] sm:$0xff]
    %v1052 = vld [vmem:[#allocation5 + $0x680] sm:$0xff]
    %v1053 = vld [vmem:[#allocation5 + $0x688] sm:$0xff]
    %v1054 = vld [vmem:[#allocation5 + $0x690] sm:$0xff]
    %v1055 = vld [vmem:[#allocation5 + $0x698] sm:$0xff]
    %v1056 = vld [vmem:[#allocation5 + $0x6a0] sm:$0xff]
    %v1057 = vld [vmem:[#allocation5 + $0x6a8] sm:$0xff]
    %v1058 = vld [vmem:[#allocation5 + $0x6b0] sm:$0xff]
    %v1059 = vld [vmem:[#allocation5 + $0x6b8] sm:$0xff]
    %v1060 = vld [vmem:[#allocation5 + $0x6c0] sm:$0xff]
    %v1061 = vld [vmem:[#allocation5 + $0x6c8] sm:$0xff]
    %v1062 = vld [vmem:[#allocation5 + $0x6d0] sm:$0xff]
    %v1063 = vld [vmem:[#allocation5 + $0x6d8] sm:$0xff]
    %v1064 = vld [vmem:[#allocation5 + $0x6e0] sm:$0xff]
    %v1065 = vld [vmem:[#allocation5 + $0x6e8] sm:$0xff]
    %v1066 = vld [vmem:[#allocation5 + $0x6f0] sm:$0xff]
    %v1067 = vld [vmem:[#allocation5 + $0x6f8] sm:$0xff]
    %v1068 = vld [vmem:[#allocation5 + $0x700] sm:$0xff]
    %v1069 = vld [vmem:[#allocation5 + $0x708] sm:$0xff]
    %v1070 = vld [vmem:[#allocation5 + $0x710] sm:$0xff]
    %v1071 = vld [vmem:[#allocation5 + $0x718] sm:$0xff]
    %v1072 = vld [vmem:[#allocation5 + $0x720] sm:$0xff]
    %v1073 = vld [vmem:[#allocation5 + $0x728] sm:$0xff]
    %v1074 = vld [vmem:[#allocation5 + $0x730] sm:$0xff]
    %v1075 = vld [vmem:[#allocation5 + $0x738] sm:$0xff]
    %v1076 = vld [vmem:[#allocation5 + $0x740] sm:$0xff]
    %v1077 = vld [vmem:[#allocation5 + $0x748] sm:$0xff]
    %v1078 = vld [vmem:[#allocation5 + $0x750] sm:$0xff]
    %v1079 = vld [vmem:[#allocation5 + $0x758] sm:$0xff]
    %v1080 = vld [vmem:[#allocation5 + $0x760] sm:$0xff]
    %v1081 = vld [vmem:[#allocation5 + $0x768] sm:$0xff]
    %v1082 = vld [vmem:[#allocation5 + $0x770] sm:$0xff]
    %v1083 = vld [vmem:[#allocation5 + $0x778] sm:$0xff]
    %v1084 = vld [vmem:[#allocation5 + $0x780] sm:$0xff]
    %v1085 = vld [vmem:[#allocation5 + $0x788] sm:$0xff]
    %v1086 = vld [vmem:[#allocation5 + $0x790] sm:$0xff]
    %v1087 = vld [vmem:[#allocation5 + $0x798] sm:$0xff]
    %v1088 = vld [vmem:[#allocation5 + $0x7a0] sm:$0xff]
    %v1089 = vld [vmem:[#allocation5 + $0x7a8] sm:$0xff]
    %v1090 = vld [vmem:[#allocation5 + $0x7b0] sm:$0xff]
    %v1091 = vld [vmem:[#allocation5 + $0x7b8] sm:$0xff]
    %v1092 = vld [vmem:[#allocation5 + $0x7c0] sm:$0xff]
    %v1093 = vld [vmem:[#allocation5 + $0x7c8] sm:$0xff]
    %v1094 = vld [vmem:[#allocation5 + $0x7d0] sm:$0xff]
    %v1095 = vld [vmem:[#allocation5 + $0x7d8] sm:$0xff]
    %v1096 = vld [vmem:[#allocation5 + $0x7e0] sm:$0xff]
    %v1097 = vld [vmem:[#allocation5 + $0x7e8] sm:$0xff]
    %v1098 = vld [vmem:[#allocation5 + $0x7f0] sm:$0xff]
    %v1099 = vld [vmem:[#allocation5 + $0x7f8] sm:$0xff]
    %v1100 = vld [vmem:[%s7] sm:$0xf]
    %v1102 = vlaneseq
    %v1103 = vshrl.u32 %v1102, 7
    %v1104 = vsub.s32 0, %v1103
    %v1105 = vrot.slane %v1100, %v1104
    %v1106 = vlaneseq
    %v1107 = vshrl.u32 %v1106, 7
    %v1108 = vsub.s32 1, %v1107
    %v1109 = vrot.slane %v1100, %v1108
    %v1110 = vlaneseq
    %v1111 = vshrl.u32 %v1110, 7
    %v1112 = vsub.s32 2, %v1111
    %v1113 = vrot.slane %v1100, %v1112
    %v1114 = vlaneseq
    %v1115 = vshrl.u32 %v1114, 7
    %v1116 = vsub.s32 3, %v1115
    %v1117 = vrot.slane %v1100, %v1116
    %1122 = vmatprep.subr.mxu0 %v845
    %1123 = vmatpush1.msra.mxu0 %v844
    %1124 = vmatprep.subr.mxu0 %v849
    %1125 = vmatpush1.msra.mxu0 %v848
    %1126 = vmatprep.subr.mxu0 %v853
    %1127 = vmatpush1.msra.mxu0 %v852
    %1128 = vmatprep.subr.mxu0 %v857
    %1129 = vmatpush1.msra.mxu0 %v856
    %1130 = vmatprep.subr.mxu0 %v861
    %1131 = vmatpush1.msra.mxu0 %v860
    %1132 = vmatprep.subr.mxu0 %v865
    %1133 = vmatpush1.msra.mxu0 %v864
    %1134 = vmatprep.subr.mxu0 %v869
    %1135 = vmatpush1.msra.mxu0 %v868
    %1136 = vmatprep.subr.mxu0 %v873
    %1137 = vmatpush1.msra.mxu0 %v872
    %1138 = vmatprep.subr.mxu0 %v877
    %1139 = vmatpush1.msra.mxu0 %v876
    %1140 = vmatprep.subr.mxu0 %v881
    %1141 = vmatpush1.msra.mxu0 %v880
    %1142 = vmatprep.subr.mxu0 %v885
    %1143 = vmatpush1.msra.mxu0 %v884
    %1144 = vmatprep.subr.mxu0 %v889
    %1145 = vmatpush1.msra.mxu0 %v888
    %1146 = vmatprep.subr.mxu0 %v893
    %1147 = vmatpush1.msra.mxu0 %v892
    %1148 = vmatprep.subr.mxu0 %v897
    %1149 = vmatpush1.msra.mxu0 %v896
    %1150 = vmatprep.subr.mxu0 %v901
    %1151 = vmatpush1.msra.mxu0 %v900
    %1152 = vmatprep.subr.mxu0 %v905
    %1153 = vmatpush1.msra.mxu0 %v904
    %1154 = vmatprep.subr.mxu0 %v909
    %1155 = vmatpush1.msra.mxu0 %v908
    %1156 = vmatprep.subr.mxu0 %v913
    %1157 = vmatpush1.msra.mxu0 %v912
    %1158 = vmatprep.subr.mxu0 %v917
    %1159 = vmatpush1.msra.mxu0 %v916
    %1160 = vmatprep.subr.mxu0 %v921
    %1161 = vmatpush1.msra.mxu0 %v920
    %1162 = vmatprep.subr.mxu0 %v925
    %1163 = vmatpush1.msra.mxu0 %v924
    %1164 = vmatprep.subr.mxu0 %v929
    %1165 = vmatpush1.msra.mxu0 %v928
    %1166 = vmatprep.subr.mxu0 %v933
    %1167 = vmatpush1.msra.mxu0 %v932
    %1168 = vmatprep.subr.mxu0 %v937
    %1169 = vmatpush1.msra.mxu0 %v936
    %1170 = vmatprep.subr.mxu0 %v941
    %1171 = vmatpush1.msra.mxu0 %v940
    %1172 = vmatprep.subr.mxu0 %v945
    %1173 = vmatpush1.msra.mxu0 %v944
    %1174 = vmatprep.subr.mxu0 %v949
    %1175 = vmatpush1.msra.mxu0 %v948
    %1176 = vmatprep.subr.mxu0 %v953
    %1177 = vmatpush1.msra.mxu0 %v952
    %1178 = vmatprep.subr.mxu0 %v957
    %1179 = vmatpush1.msra.mxu0 %v956
    %1180 = vmatprep.subr.mxu0 %v961
    %1181 = vmatpush1.msra.mxu0 %v960
    %1182 = vmatprep.subr.mxu0 %v965
    %1183 = vmatpush1.msra.mxu0 %v964
    %1184 = vmatprep.subr.mxu0 %v969
    %1185 = vmatpush1.msra.mxu0 %v968
    %1186 = vmatprep.mubr.f32.mxu0 %v841
    %1187 = vmatmul.mubr.f32.gmra.mrb[0].mxu0 %v840
    %v1188 = vpop.f32.mrb[0].mxu0
    %v1189 = vadd.f32 %v1105, %v1188
    %v1190 = vpop.f32.mrb[0].mxu0
    %v1191 = vadd.f32 %v1109, %v1190
    %1192 = vdwg.mxu0
    %1193 = vmatprep.subr.mxu0 %v973
    %1194 = vmatpush1.msra.mxu0 %v972
    %1195 = vmatprep.subr.mxu0 %v977
    %1196 = vmatpush1.msra.mxu0 %v976
    %1197 = vmatprep.subr.mxu0 %v981
    %1198 = vmatpush1.msra.mxu0 %v980
    %1199 = vmatprep.subr.mxu0 %v985
    %1200 = vmatpush1.msra.mxu0 %v984
    %1201 = vmatprep.subr.mxu0 %v989
    %1202 = vmatpush1.msra.mxu0 %v988
    %1203 = vmatprep.subr.mxu0 %v993
    %1204 = vmatpush1.msra.mxu0 %v992
    %1205 = vmatprep.subr.mxu0 %v997
    %1206 = vmatpush1.msra.mxu0 %v996
    %1207 = vmatprep.subr.mxu0 %v1001
    %1208 = vmatpush1.msra.mxu0 %v1000
    %1209 = vmatprep.subr.mxu0 %v1005
    %1210 = vmatpush1.msra.mxu0 %v1004
    %1211 = vmatprep.subr.mxu0 %v1009
    %1212 = vmatpush1.msra.mxu0 %v1008
    %1213 = vmatprep.subr.mxu0 %v1013
    %1214 = vmatpush1.msra.mxu0 %v1012
    %1215 = vmatprep.subr.mxu0 %v1017
    %1216 = vmatpush1.msra.mxu0 %v1016
    %1217 = vmatprep.subr.mxu0 %v1021
    %1218 = vmatpush1.msra.mxu0 %v1020
    %1219 = vmatprep.subr.mxu0 %v1025
    %1220 = vmatpush1.msra.mxu0 %v1024
    %1221 = vmatprep.subr.mxu0 %v1029
    %1222 = vmatpush1.msra.mxu0 %v1028
    %1223 = vmatprep.subr.mxu0 %v1033
    %1224 = vmatpush1.msra.mxu0 %v1032
    %1225 = vmatprep.subr.mxu0 %v1037
    %1226 = vmatpush1.msra.mxu0 %v1036
    %1227 = vmatprep.subr.mxu0 %v1041
    %1228 = vmatpush1.msra.mxu0 %v1040
    %1229 = vmatprep.subr.mxu0 %v1045
    %1230 = vmatpush1.msra.mxu0 %v1044
    %1231 = vmatprep.subr.mxu0 %v1049
    %1232 = vmatpush1.msra.mxu0 %v1048
    %1233 = vmatprep.subr.mxu0 %v1053
    %1234 = vmatpush1.msra.mxu0 %v1052
    %1235 = vmatprep.subr.mxu0 %v1057
    %1236 = vmatpush1.msra.mxu0 %v1056
    %1237 = vmatprep.subr.mxu0 %v1061
    %1238 = vmatpush1.msra.mxu0 %v1060
    %1239 = vmatprep.subr.mxu0 %v1065
    %1240 = vmatpush1.msra.mxu0 %v1064
    %1241 = vmatprep.subr.mxu0 %v1069
    %1242 = vmatpush1.msra.mxu0 %v1068
    %1243 = vmatprep.subr.mxu0 %v1073
    %1244 = vmatpush1.msra.mxu0 %v1072
    %1245 = vmatprep.subr.mxu0 %v1077
    %1246 = vmatpush1.msra.mxu0 %v1076
    %1247 = vmatprep.subr.mxu0 %v1081
    %1248 = vmatpush1.msra.mxu0 %v1080
    %1249 = vmatprep.subr.mxu0 %v1085
    %1250 = vmatpush1.msra.mxu0 %v1084
    %1251 = vmatprep.subr.mxu0 %v1089
    %1252 = vmatpush1.msra.mxu0 %v1088
    %1253 = vmatprep.subr.mxu0 %v1093
    %1254 = vmatpush1.msra.mxu0 %v1092
    %1255 = vmatprep.subr.mxu0 %v1097
    %1256 = vmatpush1.msra.mxu0 %v1096
    %1257 = vmatprep.mubr.f32.mxu0 %v843
    %1258 = vmatmul.mubr.f32.gmra.mrb[0].mxu0 %v842
    %v1259 = vpop.f32.mrb[0].mxu0
    %v1260 = vadd.f32 %v1189, %v1259
    %v1261 = vpop.f32.mrb[0].mxu0
    %v1262 = vadd.f32 %v1191, %v1261
    %1263 = vdwg.mxu0
    %1264 = vmatprep.subr.mxu0 %v847
    %1265 = vmatpush1.msra.mxu0 %v846
    %1266 = vmatprep.subr.mxu0 %v851
    %1267 = vmatpush1.msra.mxu0 %v850
    %1268 = vmatprep.subr.mxu0 %v855
    %1269 = vmatpush1.msra.mxu0 %v854
    %1270 = vmatprep.subr.mxu0 %v859
    %1271 = vmatpush1.msra.mxu0 %v858
    %1272 = vmatprep.subr.mxu0 %v863
    %1273 = vmatpush1.msra.mxu0 %v862
    %1274 = vmatprep.subr.mxu0 %v867
    %1275 = vmatpush1.msra.mxu0 %v866
    %1276 = vmatprep.subr.mxu0 %v871
    %1277 = vmatpush1.msra.mxu0 %v870
    %1278 = vmatprep.subr.mxu0 %v875
    %1279 = vmatpush1.msra.mxu0 %v874
    %1280 = vmatprep.subr.mxu0 %v879
    %1281 = vmatpush1.msra.mxu0 %v878
    %1282 = vmatprep.subr.mxu0 %v883
    %1283 = vmatpush1.msra.mxu0 %v882
    %1284 = vmatprep.subr.mxu0 %v887
    %1285 = vmatpush1.msra.mxu0 %v886
    %1286 = vmatprep.subr.mxu0 %v891
    %1287 = vmatpush1.msra.mxu0 %v890
    %1288 = vmatprep.subr.mxu0 %v895
    %1289 = vmatpush1.msra.mxu0 %v894
    %1290 = vmatprep.subr.mxu0 %v899
    %1291 = vmatpush1.msra.mxu0 %v898
    %1292 = vmatprep.subr.mxu0 %v903
    %1293 = vmatpush1.msra.mxu0 %v902
    %1294 = vmatprep.subr.mxu0 %v907
    %1295 = vmatpush1.msra.mxu0 %v906
    %1296 = vmatprep.subr.mxu0 %v911
    %1297 = vmatpush1.msra.mxu0 %v910
    %1298 = vmatprep.subr.mxu0 %v915
    %1299 = vmatpush1.msra.mxu0 %v914
    %1300 = vmatprep.subr.mxu0 %v919
    %1301 = vmatpush1.msra.mxu0 %v918
    %1302 = vmatprep.subr.mxu0 %v923
    %1303 = vmatpush1.msra.mxu0 %v922
    %1304 = vmatprep.subr.mxu0 %v927
    %1305 = vmatpush1.msra.mxu0 %v926
    %1306 = vmatprep.subr.mxu0 %v931
    %1307 = vmatpush1.msra.mxu0 %v930
    %1308 = vmatprep.subr.mxu0 %v935
    %1309 = vmatpush1.msra.mxu0 %v934
    %1310 = vmatprep.subr.mxu0 %v939
    %1311 = vmatpush1.msra.mxu0 %v938
    %1312 = vmatprep.subr.mxu0 %v943
    %1313 = vmatpush1.msra.mxu0 %v942
    %1314 = vmatprep.subr.mxu0 %v947
    %1315 = vmatpush1.msra.mxu0 %v946
    %1316 = vmatprep.subr.mxu0 %v951
    %1317 = vmatpush1.msra.mxu0 %v950
    %1318 = vmatprep.subr.mxu0 %v955
    %1319 = vmatpush1.msra.mxu0 %v954
    %1320 = vmatprep.subr.mxu0 %v959
    %1321 = vmatpush1.msra.mxu0 %v958
    %1322 = vmatprep.subr.mxu0 %v963
    %1323 = vmatpush1.msra.mxu0 %v962
    %1324 = vmatprep.subr.mxu0 %v967
    %1325 = vmatpush1.msra.mxu0 %v966
    %1326 = vmatprep.subr.mxu0 %v971
    %1327 = vmatpush1.msra.mxu0 %v970
    %1328 = vmatprep.mubr.f32.mxu0 %v841
    %1329 = vmatmul.mubr.f32.gmra.mrb[0].mxu0 %v840
    %v1330 = vpop.f32.mrb[0].mxu0
    %v1331 = vadd.f32 %v1113, %v1330
    %v1332 = vpop.f32.mrb[0].mxu0
    %v1333 = vadd.f32 %v1117, %v1332
    %1334 = vdwg.mxu0
    %1335 = vmatprep.subr.mxu0 %v975
    %1336 = vmatpush1.msra.mxu0 %v974
    %1337 = vmatprep.subr.mxu0 %v979
    %1338 = vmatpush1.msra.mxu0 %v978
    %1339 = vmatprep.subr.mxu0 %v983
    %1340 = vmatpush1.msra.mxu0 %v982
    %1341 = vmatprep.subr.mxu0 %v987
    %1342 = vmatpush1.msra.mxu0 %v986
    %1343 = vmatprep.subr.mxu0 %v991
    %1344 = vmatpush1.msra.mxu0 %v990
    %1345 = vmatprep.subr.mxu0 %v995
    %1346 = vmatpush1.msra.mxu0 %v994
    %1347 = vmatprep.subr.mxu0 %v999
    %1348 = vmatpush1.msra.mxu0 %v998
    %1349 = vmatprep.subr.mxu0 %v1003
    %1350 = vmatpush1.msra.mxu0 %v1002
    %1351 = vmatprep.subr.mxu0 %v1007
    %1352 = vmatpush1.msra.mxu0 %v1006
    %1353 = vmatprep.subr.mxu0 %v1011
    %1354 = vmatpush1.msra.mxu0 %v1010
    %1355 = vmatprep.subr.mxu0 %v1015
    %1356 = vmatpush1.msra.mxu0 %v1014
    %1357 = vmatprep.subr.mxu0 %v1019
    %1358 = vmatpush1.msra.mxu0 %v1018
    %1359 = vmatprep.subr.mxu0 %v1023
    %1360 = vmatpush1.msra.mxu0 %v1022
    %1361 = vmatprep.subr.mxu0 %v1027
    %1362 = vmatpush1.msra.mxu0 %v1026
    %1363 = vmatprep.subr.mxu0 %v1031
    %1364 = vmatpush1.msra.mxu0 %v1030
    %1365 = vmatprep.subr.mxu0 %v1035
    %1366 = vmatpush1.msra.mxu0 %v1034
    %1367 = vmatprep.subr.mxu0 %v1039
    %1368 = vmatpush1.msra.mxu0 %v1038
    %1369 = vmatprep.subr.mxu0 %v1043
    %1370 = vmatpush1.msra.mxu0 %v1042
    %1371 = vmatprep.subr.mxu0 %v1047
    %1372 = vmatpush1.msra.mxu0 %v1046
    %1373 = vmatprep.subr.mxu0 %v1051
    %1374 = vmatpush1.msra.mxu0 %v1050
    %1375 = vmatprep.subr.mxu0 %v1055
    %1376 = vmatpush1.msra.mxu0 %v1054
    %1377 = vmatprep.subr.mxu0 %v1059
    %1378 = vmatpush1.msra.mxu0 %v1058
    %1379 = vmatprep.subr.mxu0 %v1063
    %1380 = vmatpush1.msra.mxu0 %v1062
    %1381 = vmatprep.subr.mxu0 %v1067
    %1382 = vmatpush1.msra.mxu0 %v1066
    %1383 = vmatprep.subr.mxu0 %v1071
    %1384 = vmatpush1.msra.mxu0 %v1070
    %1385 = vmatprep.subr.mxu0 %v1075
    %1386 = vmatpush1.msra.mxu0 %v1074
    %1387 = vmatprep.subr.mxu0 %v1079
    %1388 = vmatpush1.msra.mxu0 %v1078
    %1389 = vmatprep.subr.mxu0 %v1083
    %1390 = vmatpush1.msra.mxu0 %v1082
    %1391 = vmatprep.subr.mxu0 %v1087
    %1392 = vmatpush1.msra.mxu0 %v1086
    %1393 = vmatprep.subr.mxu0 %v1091
    %1394 = vmatpush1.msra.mxu0 %v1090
    %1395 = vmatprep.subr.mxu0 %v1095
    %1396 = vmatpush1.msra.mxu0 %v1094
    %1397 = vmatprep.subr.mxu0 %v1099
    %1398 = vmatpush1.msra.mxu0 %v1098
    %1399 = vmatprep.mubr.f32.mxu0 %v843
    %1400 = vmatmul.mubr.f32.gmra.mrb[0].mxu0 %v842
    %v1401 = vpop.f32.mrb[0].mxu0
    %v1402 = vadd.f32 %v1331, %v1401
    %v1403 = vpop.f32.mrb[0].mxu0
    %v1404 = vadd.f32 %v1333, %v1403
    %1405 = vdwg.mxu0
    %v1406 = vmax.f32 %v1260, 0.0
    %v1407 = vmax.f32 %v1262, 0.0
    %v1408 = vmax.f32 %v1402, 0.0
    %v1409 = vmax.f32 %v1404, 0.0
    %v1410 = vld [vmem:[%s8] sm:$0xff]
    %v1411 = vld [vmem:[%s8 + $0x8] sm:$0xff]
    %v1412 = vld [vmem:[%s8 + $0x10] sm:$0xff]
    %v1413 = vld [vmem:[%s8 + $0x18] sm:$0xff]
    %v1414 = vld [vmem:[%s8 + $0x20] sm:$0xff]
    %v1415 = vld [vmem:[%s8 + $0x28] sm:$0xff]
    %v1416 = vld [vmem:[%s8 + $0x30] sm:$0xff]
    %v1417 = vld [vmem:[%s8 + $0x38] sm:$0xff]
    %v1418 = vld [vmem:[%s8 + $0x40] sm:$0xff]
    %v1419 = vld [vmem:[%s8 + $0x48] sm:$0xff]
    %v1420 = vld [vmem:[%s8 + $0x50] sm:$0xff]
    %v1421 = vld [vmem:[%s8 + $0x58] sm:$0xff]
    %v1422 = vld [vmem:[%s8 + $0x60] sm:$0xff]
    %v1423 = vld [vmem:[%s8 + $0x68] sm:$0xff]
    %v1424 = vld [vmem:[%s8 + $0x70] sm:$0xff]
    %v1425 = vld [vmem:[%s8 + $0x78] sm:$0xff]
    %v1426 = vld [vmem:[%s8 + $0x80] sm:$0xff]
    %v1427 = vld [vmem:[%s8 + $0x88] sm:$0xff]
    %v1428 = vld [vmem:[%s8 + $0x90] sm:$0xff]
    %v1429 = vld [vmem:[%s8 + $0x98] sm:$0xff]
    %v1430 = vld [vmem:[%s8 + $0xa0] sm:$0xff]
    %v1431 = vld [vmem:[%s8 + $0xa8] sm:$0xff]
    %v1432 = vld [vmem:[%s8 + $0xb0] sm:$0xff]
    %v1433 = vld [vmem:[%s8 + $0xb8] sm:$0xff]
    %v1434 = vld [vmem:[%s8 + $0xc0] sm:$0xff]
    %v1435 = vld [vmem:[%s8 + $0xc8] sm:$0xff]
    %v1436 = vld [vmem:[%s8 + $0xd0] sm:$0xff]
    %v1437 = vld [vmem:[%s8 + $0xd8] sm:$0xff]
    %v1438 = vld [vmem:[%s8 + $0xe0] sm:$0xff]
    %v1439 = vld [vmem:[%s8 + $0xe8] sm:$0xff]
    %v1440 = vld [vmem:[%s8 + $0xf0] sm:$0xff]
    %v1441 = vld [vmem:[%s8 + $0xf8] sm:$0xff]
    %v1442 = vld [vmem:[%s8 + $0x100] sm:$0xff]
    %v1443 = vld [vmem:[%s8 + $0x108] sm:$0xff]
    %v1444 = vld [vmem:[%s8 + $0x110] sm:$0xff]
    %v1445 = vld [vmem:[%s8 + $0x118] sm:$0xff]
    %v1446 = vld [vmem:[%s8 + $0x120] sm:$0xff]
    %v1447 = vld [vmem:[%s8 + $0x128] sm:$0xff]
    %v1448 = vld [vmem:[%s8 + $0x130] sm:$0xff]
    %v1449 = vld [vmem:[%s8 + $0x138] sm:$0xff]
    %v1450 = vld [vmem:[%s8 + $0x140] sm:$0xff]
    %v1451 = vld [vmem:[%s8 + $0x148] sm:$0xff]
    %v1452 = vld [vmem:[%s8 + $0x150] sm:$0xff]
    %v1453 = vld [vmem:[%s8 + $0x158] sm:$0xff]
    %v1454 = vld [vmem:[%s8 + $0x160] sm:$0xff]
    %v1455 = vld [vmem:[%s8 + $0x168] sm:$0xff]
    %v1456 = vld [vmem:[%s8 + $0x170] sm:$0xff]
    %v1457 = vld [vmem:[%s8 + $0x178] sm:$0xff]
    %v1458 = vld [vmem:[%s8 + $0x180] sm:$0xff]
    %v1459 = vld [vmem:[%s8 + $0x188] sm:$0xff]
    %v1460 = vld [vmem:[%s8 + $0x190] sm:$0xff]
    %v1461 = vld [vmem:[%s8 + $0x198] sm:$0xff]
    %v1462 = vld [vmem:[%s8 + $0x1a0] sm:$0xff]
    %v1463 = vld [vmem:[%s8 + $0x1a8] sm:$0xff]
    %v1464 = vld [vmem:[%s8 + $0x1b0] sm:$0xff]
    %v1465 = vld [vmem:[%s8 + $0x1b8] sm:$0xff]
    %v1466 = vld [vmem:[%s8 + $0x1c0] sm:$0xff]
    %v1467 = vld [vmem:[%s8 + $0x1c8] sm:$0xff]
    %v1468 = vld [vmem:[%s8 + $0x1d0] sm:$0xff]
    %v1469 = vld [vmem:[%s8 + $0x1d8] sm:$0xff]
    %v1470 = vld [vmem:[%s8 + $0x1e0] sm:$0xff]
    %v1471 = vld [vmem:[%s8 + $0x1e8] sm:$0xff]
    %v1472 = vld [vmem:[%s8 + $0x1f0] sm:$0xff]
    %v1473 = vld [vmem:[%s8 + $0x1f8] sm:$0xff]
    %v1474 = vld [vmem:[%s9] sm:$0x1]
    %v1476 = vlaneseq
    %v1477 = vshrl.u32 %v1476, 7
    %v1478 = vsub.s32 0, %v1477
    %v1479 = vrot.slane %v1474, %v1478
    %1481 = vmatprep.subr.mxu0 0.0
    %1482 = vmatpush1.msra.mxu0 %v1410
    %1483 = vmatprep.subr.mxu0 0.0
    %1484 = vmatpush1.msra.mxu0 %v1411
    %1485 = vmatprep.subr.mxu0 0.0
    %1486 = vmatpush1.msra.mxu0 %v1412
    %1487 = vmatprep.subr.mxu0 0.0
    %1488 = vmatpush1.msra.mxu0 %v1413
    %1489 = vmatprep.subr.mxu0 0.0
    %1490 = vmatpush1.msra.mxu0 %v1414
    %1491 = vmatprep.subr.mxu0 0.0
    %1492 = vmatpush1.msra.mxu0 %v1415
    %1493 = vmatprep.subr.mxu0 0.0
    %1494 = vmatpush1.msra.mxu0 %v1416
    %1495 = vmatprep.subr.mxu0 0.0
    %1496 = vmatpush1.msra.mxu0 %v1417
    %1497 = vmatprep.subr.mxu0 0.0
    %1498 = vmatpush1.msra.mxu0 %v1418
    %1499 = vmatprep.subr.mxu0 0.0
    %1500 = vmatpush1.msra.mxu0 %v1419
    %1501 = vmatprep.subr.mxu0 0.0
    %1502 = vmatpush1.msra.mxu0 %v1420
    %1503 = vmatprep.subr.mxu0 0.0
    %1504 = vmatpush1.msra.mxu0 %v1421
    %1505 = vmatprep.subr.mxu0 0.0
    %1506 = vmatpush1.msra.mxu0 %v1422
    %1507 = vmatprep.subr.mxu0 0.0
    %1508 = vmatpush1.msra.mxu0 %v1423
    %1509 = vmatprep.subr.mxu0 0.0
    %1510 = vmatpush1.msra.mxu0 %v1424
    %1511 = vmatprep.subr.mxu0 0.0
    %1512 = vmatpush1.msra.mxu0 %v1425
    %1513 = vmatprep.subr.mxu0 0.0
    %1514 = vmatpush1.msra.mxu0 %v1426
    %1515 = vmatprep.subr.mxu0 0.0
    %1516 = vmatpush1.msra.mxu0 %v1427
    %1517 = vmatprep.subr.mxu0 0.0
    %1518 = vmatpush1.msra.mxu0 %v1428
    %1519 = vmatprep.subr.mxu0 0.0
    %1520 = vmatpush1.msra.mxu0 %v1429
    %1521 = vmatprep.subr.mxu0 0.0
    %1522 = vmatpush1.msra.mxu0 %v1430
    %1523 = vmatprep.subr.mxu0 0.0
    %1524 = vmatpush1.msra.mxu0 %v1431
    %1525 = vmatprep.subr.mxu0 0.0
    %1526 = vmatpush1.msra.mxu0 %v1432
    %1527 = vmatprep.subr.mxu0 0.0
    %1528 = vmatpush1.msra.mxu0 %v1433
    %1529 = vmatprep.subr.mxu0 0.0
    %1530 = vmatpush1.msra.mxu0 %v1434
    %1531 = vmatprep.subr.mxu0 0.0
    %1532 = vmatpush1.msra.mxu0 %v1435
    %1533 = vmatprep.subr.mxu0 0.0
    %1534 = vmatpush1.msra.mxu0 %v1436
    %1535 = vmatprep.subr.mxu0 0.0
    %1536 = vmatpush1.msra.mxu0 %v1437
    %1537 = vmatprep.subr.mxu0 0.0
    %1538 = vmatpush1.msra.mxu0 %v1438
    %1539 = vmatprep.subr.mxu0 0.0
    %1540 = vmatpush1.msra.mxu0 %v1439
    %1541 = vmatprep.subr.mxu0 0.0
    %1542 = vmatpush1.msra.mxu0 %v1440
    %1543 = vmatprep.subr.mxu0 0.0
    %1544 = vmatpush1.msra.mxu0 %v1441
    %1545 = vmatprep.mubr.f32.mxu0 %v1407
    %1546 = vmatmul.mubr.f32.gmra.mrb[0].mxu0 %v1406
    %v1547 = vpop.f32.mrb[0].mxu0
    %v1548 = vadd.f32 %v1479, %v1547
    %v1549 = vpop.f32.mrb[0].mxu0
    %1550 = vdwg.mxu0
    %1551 = vmatprep.subr.mxu0 0.0
    %1552 = vmatpush1.msra.mxu0 %v1442
    %1553 = vmatprep.subr.mxu0 0.0
    %1554 = vmatpush1.msra.mxu0 %v1443
    %1555 = vmatprep.subr.mxu0 0.0
    %1556 = vmatpush1.msra.mxu0 %v1444
    %1557 = vmatprep.subr.mxu0 0.0
    %1558 = vmatpush1.msra.mxu0 %v1445
    %1559 = vmatprep.subr.mxu0 0.0
    %1560 = vmatpush1.msra.mxu0 %v1446
    %1561 = vmatprep.subr.mxu0 0.0
    %1562 = vmatpush1.msra.mxu0 %v1447
    %1563 = vmatprep.subr.mxu0 0.0
    %1564 = vmatpush1.msra.mxu0 %v1448
    %1565 = vmatprep.subr.mxu0 0.0
    %1566 = vmatpush1.msra.mxu0 %v1449
    %1567 = vmatprep.subr.mxu0 0.0
    %1568 = vmatpush1.msra.mxu0 %v1450
    %1569 = vmatprep.subr.mxu0 0.0
    %1570 = vmatpush1.msra.mxu0 %v1451
    %1571 = vmatprep.subr.mxu0 0.0
    %1572 = vmatpush1.msra.mxu0 %v1452
    %1573 = vmatprep.subr.mxu0 0.0
    %1574 = vmatpush1.msra.mxu0 %v1453
    %1575 = vmatprep.subr.mxu0 0.0
    %1576 = vmatpush1.msra.mxu0 %v1454
    %1577 = vmatprep.subr.mxu0 0.0
    %1578 = vmatpush1.msra.mxu0 %v1455
    %1579 = vmatprep.subr.mxu0 0.0
    %1580 = vmatpush1.msra.mxu0 %v1456
    %1581 = vmatprep.subr.mxu0 0.0
    %1582 = vmatpush1.msra.mxu0 %v1457
    %1583 = vmatprep.subr.mxu0 0.0
    %1584 = vmatpush1.msra.mxu0 %v1458
    %1585 = vmatprep.subr.mxu0 0.0
    %1586 = vmatpush1.msra.mxu0 %v1459
    %1587 = vmatprep.subr.mxu0 0.0
    %1588 = vmatpush1.msra.mxu0 %v1460
    %1589 = vmatprep.subr.mxu0 0.0
    %1590 = vmatpush1.msra.mxu0 %v1461
    %1591 = vmatprep.subr.mxu0 0.0
    %1592 = vmatpush1.msra.mxu0 %v1462
    %1593 = vmatprep.subr.mxu0 0.0
    %1594 = vmatpush1.msra.mxu0 %v1463
    %1595 = vmatprep.subr.mxu0 0.0
    %1596 = vmatpush1.msra.mxu0 %v1464
    %1597 = vmatprep.subr.mxu0 0.0
    %1598 = vmatpush1.msra.mxu0 %v1465
    %1599 = vmatprep.subr.mxu0 0.0
    %1600 = vmatpush1.msra.mxu0 %v1466
    %1601 = vmatprep.subr.mxu0 0.0
    %1602 = vmatpush1.msra.mxu0 %v1467
    %1603 = vmatprep.subr.mxu0 0.0
    %1604 = vmatpush1.msra.mxu0 %v1468
    %1605 = vmatprep.subr.mxu0 0.0
    %1606 = vmatpush1.msra.mxu0 %v1469
    %1607 = vmatprep.subr.mxu0 0.0
    %1608 = vmatpush1.msra.mxu0 %v1470
    %1609 = vmatprep.subr.mxu0 0.0
    %1610 = vmatpush1.msra.mxu0 %v1471
    %1611 = vmatprep.subr.mxu0 0.0
    %1612 = vmatpush1.msra.mxu0 %v1472
    %1613 = vmatprep.subr.mxu0 0.0
    %1614 = vmatpush1.msra.mxu0 %v1473
    %1615 = vmatprep.mubr.f32.mxu0 %v1409
    %1616 = vmatmul.mubr.f32.gmra.mrb[0].mxu0 %v1408
    %v1617 = vpop.f32.mrb[0].mxu0
    %v1618 = vadd.f32 %v1548, %v1617
    %v1619 = vpop.f32.mrb[0].mxu0
    %1620 = vdwg.mxu0
    %v1621 = vld [vmem:[%s1] sm:$0xf]
    %1623 = vrot.lane.b32.xlu0 %v1621, 16
    %v1624 = vpop.permute.xlu0 %1623
    %vm1626 = vcmask 130048
    %v1627 = vsel %vm1626, %v1618, %v1624
    %v1628 = vld [vmem:[%s10] sm:$0xff]
    %v1629 = vld [vmem:[%s10 + $0x8] sm:$0xff]
    %v1630 = vld [vmem:[%s10 + $0x10] sm:$0x7]
    %vm1631 = vcmask 154624
    %v1633 = vsel %vm1631, %v1627, 0
    %vm1635 = vcmask 1042432
    %v1637 = vsel %vm1635, %v1630, 0
    %1639 = vmatprep.subr.mxu0 0.0
    %1640 = vmatpush1.msra.mxu0 %v1628
    %1641 = vmatprep.subr.mxu0 0.0
    %1642 = vmatpush1.msra.mxu0 %v1629
    %1643 = vmatprep.subr.mxu0 0.0
    %1644 = vmatpush1.msra.mxu0 %v1637
    %1645 = vmatprep.subr.mxu0 0.0
    %1646 = vmatpush1.msra.mxu0 0.0
    %1647 = vmatprep.subr.mxu0 0.0
    %1648 = vmatpush1.msra.mxu0 0.0
    %1649 = vmatprep.subr.mxu0 0.0
    %1650 = vmatpush1.msra.mxu0 0.0
    %1651 = vmatprep.subr.mxu0 0.0
    %1652 = vmatpush1.msra.mxu0 0.0
    %1653 = vmatprep.subr.mxu0 0.0
    %1654 = vmatpush1.msra.mxu0 0.0
    %1655 = vmatprep.subr.mxu0 0.0
    %1656 = vmatpush1.msra.mxu0 0.0
    %1657 = vmatprep.subr.mxu0 0.0
    %1658 = vmatpush1.msra.mxu0 0.0
    %1659 = vmatprep.subr.mxu0 0.0
    %1660 = vmatpush1.msra.mxu0 0.0
    %1661 = vmatprep.subr.mxu0 0.0
    %1662 = vmatpush1.msra.mxu0 0.0
    %1663 = vmatprep.subr.mxu0 0.0
    %1664 = vmatpush1.msra.mxu0 0.0
    %1665 = vmatprep.subr.mxu0 0.0
    %1666 = vmatpush1.msra.mxu0 0.0
    %1667 = vmatprep.subr.mxu0 0.0
    %1668 = vmatpush1.msra.mxu0 0.0
    %1669 = vmatprep.subr.mxu0 0.0
    %1670 = vmatpush1.msra.mxu0 0.0
    %1671 = vmatprep.subr.mxu0 0.0
    %1672 = vmatpush1.msra.mxu0 0.0
    %1673 = vmatprep.subr.mxu0 0.0
    %1674 = vmatpush1.msra.mxu0 0.0
    %1675 = vmatprep.subr.mxu0 0.0
    %1676 = vmatpush1.msra.mxu0 0.0
    %1677 = vmatprep.subr.mxu0 0.0
    %1678 = vmatpush1.msra.mxu0 0.0
    %1679 = vmatprep.subr.mxu0 0.0
    %1680 = vmatpush1.msra.mxu0 0.0
    %1681 = vmatprep.subr.mxu0 0.0
    %1682 = vmatpush1.msra.mxu0 0.0
    %1683 = vmatprep.subr.mxu0 0.0
    %1684 = vmatpush1.msra.mxu0 0.0
    %1685 = vmatprep.subr.mxu0 0.0
    %1686 = vmatpush1.msra.mxu0 0.0
    %1687 = vmatprep.subr.mxu0 0.0
    %1688 = vmatpush1.msra.mxu0 0.0
    %1689 = vmatprep.subr.mxu0 0.0
    %1690 = vmatpush1.msra.mxu0 0.0
    %1691 = vmatprep.subr.mxu0 0.0
    %1692 = vmatpush1.msra.mxu0 0.0
    %1693 = vmatprep.subr.mxu0 0.0
    %1694 = vmatpush1.msra.mxu0 0.0
    %1695 = vmatprep.subr.mxu0 0.0
    %1696 = vmatpush1.msra.mxu0 0.0
    %1697 = vmatprep.subr.mxu0 0.0
    %1698 = vmatpush1.msra.mxu0 0.0
    %1699 = vmatprep.subr.mxu0 0.0
    %1700 = vmatpush1.msra.mxu0 0.0
    %1701 = vmatprep.subr.mxu0 0.0
    %1702 = vmatpush1.msra.mxu0 0.0
    %1703 = vmatprep.mubr.f32.mxu0 0.0
    %1704 = vmatmul.mubr.f32.gmra.mrb[0].mxu0 %v1633
    %v1705 = vpop.f32.mrb[0].mxu0
    %v1706 = vadd.f32 0.0, %v1705
    %v1707 = vpop.f32.mrb[0].mxu0
    %1708 = vdwg.mxu0
    %1709 = vrot.lane.b32.xlu0 %v1627, 19
    %v1710 = vpop.permute.xlu0 %1709
    %1712 = vrot.lane.b32.xlu0 %v1627, 38
    %v1713 = vpop.permute.xlu0 %1712
    %v1715 = vsel %vm1631, %v1627, %v1710
    %vm1716 = vcmask 310272
    %v1717 = vsel %vm1716, %v1715, %v1713
    %v1718 = vand.u32 2147483647, %v1627
    %vm1719 = vcmp.le.f32.partialorder %v1718, 0.7853982
    %vm1720 = vcmp.lt.s32.totalorder %v1627, 0
    %v1721 = vand.u32 %v1627, 2139095040
    %v1722 = vshrl.u32 %v1721, 23
    %v1723 = vsub.s32 %v1722, 127
    %v1724 = vand.u32 2147483647, %v1627
    %v1725 = vand.u32 %v1724, 8388607
    %v1726 = vor.u32 %v1725, 8388608
    %v1727 = vsub.s32 0, %v1726
    %v1728 = vadd.s32 %v1723, 1
    %vm1729 = vcmp.gt.s32.totalorder %v1728, 0
    %v1730 = vsel %vm1729, %v1728, 0
    %v1731 = vshrl.u32 %v1730, 5
    %v1732 = vand.u32 %v1730, 31
    %v1733 = vsub.s32 32, %v1732
    %v1734 = vshrl.u32 683565275, %v1733
    %v1735 = vshll.u32 683565275, %v1732
    %v1736 = vshrl.u32 2475754826, %v1733
    %v1737 = vor.u32 %v1735, %v1736
    %v1738 = vshll.u32 2475754826, %v1732
    %v1739 = vshrl.u32 2131351028, %v1733
    %v1740 = vor.u32 %v1738, %v1739
    %v1741 = vshll.u32 2131351028, %v1732
    %v1742 = vshrl.u32 2102212464, %v1733
    %v1743 = vor.u32 %v1741, %v1742
    %v1744 = vshll.u32 2102212464, %v1732
    %v1745 = vshrl.u32 920167782, %v1733
    %v1746 = vor.u32 %v1744, %v1745
    %v1747 = vshll.u32 920167782, %v1732
    %v1748 = vshrl.u32 1326507024, %v1733
    %v1749 = vor.u32 %v1747, %v1748
    %vm1750 = vcmp.lt.s32.totalorder %v1731, 1
    %vm1751 = vcmp.lt.s32.totalorder %v1731, 2
    %vm1752 = vcmp.lt.s32.totalorder %v1731, 3
    %vm1753 = vcmp.lt.s32.totalorder %v1731, 4
    %v1754 = vsel %vm1750, %v1734, %v1737
    %v1755 = vsel %vm1753, %v1743, 2102212464
    %v1756 = vsel %vm1752, %v1740, %v1755
    %v1757 = vsel %vm1751, %v1754, %v1756
    %v1758 = vsel %vm1750, %v1737, %v1740
    %v1759 = vsel %vm1753, %v1746, 920167782
    %v1760 = vsel %vm1752, %v1743, %v1759
    %v1761 = vsel %vm1751, %v1758, %v1760
    %v1762 = vsel %vm1750, %v1740, %v1743
    %v1763 = vsel %vm1753, %v1749, 1326507024
    %v1764 = vsel %vm1752, %v1746, %v1763
    %v1765 = vsel %vm1751, %v1762, %v1764
    %v1766 = vshll.u32 %v1726, 8
    %v1767 = vmul.u32.u64.compose %v1766, %v1765
    %v1768 = vextract.low.u32 %v1767
    %v1769 = vextract.high.u32 %v1767
    %v1770 = vmul.u32.u64.compose %v1766, %v1761
    %v1771 = vextract.low.u32 %v1770
    %v1772 = vextract.high.u32 %v1770
    %v1773 = vmul.u32 %v1766, %v1757
    %v1774 = vadd.s32 %v1769, %v1771
    %vm1775 = vc.u32 %v1769, %v1771
    %v1776 = vadd.s32 %v1772, 1
    %v1777 = vsel %vm1775, %v1776, %v1772
    %v1778 = vadd.s32 %v1773, %v1777
    %v1779 = vadd.s32 %v1778, 536870912
    %v1780 = vshrl.u32 %v1779, 30
    %v1781 = vshll.u32 %v1780, 30
    %v1782 = vsub.s32 %v1778, %v1781
    %vm1783 = vcmp.lt.s32.totalorder %v1782, 0
    %v1784 = vsub.s32 0, %v1782
    %v1785 = vsel %vm1783, %v1784, %v1782
    %v1786 = vclz %v1785
    %v1787 = vsub.s32 %v1786, 2
    %vm1788 = vcmp.gt.s32.totalorder 0, %v1787
    %v1789 = vsel %vm1788, 0, %v1787
    %v1790 = vsub.s32 32, %v1789
    %v1791 = vshll.u32 %v1782, %v1789
    %v1792 = vshrl.u32 %v1774, %v1790
    %v1793 = vor.u32 %v1791, %v1792
    %v1794 = vsub.s32 4294967266, %v1789
    %v1795 = vadd.s32 %v1794, 127
    %v1796 = vshll.u32 %v1795, 23
    %v1797 = vor.u32 4788187, %v1796
    %v1798 = vand.u32 2147483647, %v1797
    %v1800 = vcvt.s32.f32 %v1793
    %v1801 = vmul.f32 %v1800, %v1798
    %v1802 = vxor.u32 %v1801, 2147483648
    %v1803 = vsel %vm1720, %v1802, %v1801
    %v1804 = vsub.s32 4, %v1780
    %v1805 = vsel %vm1720, %v1804, %v1780
    %v1806 = vsel %vm1719, %v1627, %v1803
    %v1807 = vsel %vm1719, 0, %v1805
    %v1808 = vcosq.f32.pop %v1806
    %v1809 = vsinq.f32.pop %v1806
    %vm1810 = vweird.f32 %v1627
    %v1811 = vadd.s32 %v1807, 3
    %v1812 = vand.u32 %v1811, 3
    %vm1813 = vcmp.lt.s32.totalorder %v1812, 2
    %vm1814 = vcmp.eq.s32.totalorder %v1812, 0
    %v1815 = vxor.u32 %v1809, 2147483648
    %v1816 = vsel %vm1814, %v1808, %v1815
    %vm1817 = vcmp.eq.s32.totalorder %v1812, 2
    %v1818 = vxor.u32 %v1808, 2147483648
    %v1819 = vsel %vm1817, %v1818, %v1809
    %v1820 = vsel %vm1813, %v1816, %v1819
    %v1821 = vsel %vm1810, nan, %v1820
    %v1822 = vand.u32 2147483647, %v1627
    %vm1823 = vcmp.le.f32.partialorder %v1822, 0.7853982
    %vm1824 = vcmp.lt.s32.totalorder %v1627, 0
    %v1825 = vand.u32 %v1627, 2139095040
    %v1826 = vshrl.u32 %v1825, 23
    %v1827 = vsub.s32 %v1826, 127
    %v1828 = vand.u32 2147483647, %v1627
    %v1829 = vand.u32 %v1828, 8388607
    %v1830 = vor.u32 %v1829, 8388608
    %v1831 = vsub.s32 0, %v1830
    %v1832 = vadd.s32 %v1827, 1
    %vm1833 = vcmp.gt.s32.totalorder %v1832, 0
    %v1834 = vsel %vm1833, %v1832, 0
    %v1835 = vshrl.u32 %v1834, 5
    %v1836 = vand.u32 %v1834, 31
    %v1837 = vsub.s32 32, %v1836
    %v1838 = vshrl.u32 683565275, %v1837
    %v1839 = vshll.u32 683565275, %v1836
    %v1840 = vshrl.u32 2475754826, %v1837
    %v1841 = vor.u32 %v1839, %v1840
    %v1842 = vshll.u32 2475754826, %v1836
    %v1843 = vshrl.u32 2131351028, %v1837
    %v1844 = vor.u32 %v1842, %v1843
    %v1845 = vshll.u32 2131351028, %v1836
    %v1846 = vshrl.u32 2102212464, %v1837
    %v1847 = vor.u32 %v1845, %v1846
    %v1848 = vshll.u32 2102212464, %v1836
    %v1849 = vshrl.u32 920167782, %v1837
    %v1850 = vor.u32 %v1848, %v1849
    %v1851 = vshll.u32 920167782, %v1836
    %v1852 = vshrl.u32 1326507024, %v1837
    %v1853 = vor.u32 %v1851, %v1852
    %vm1854 = vcmp.lt.s32.totalorder %v1835, 1
    %vm1855 = vcmp.lt.s32.totalorder %v1835, 2
    %vm1856 = vcmp.lt.s32.totalorder %v1835, 3
    %vm1857 = vcmp.lt.s32.totalorder %v1835, 4
    %v1858 = vsel %vm1854, %v1838, %v1841
    %v1859 = vsel %vm1857, %v1847, 2102212464
    %v1860 = vsel %vm1856, %v1844, %v1859
    %v1861 = vsel %vm1855, %v1858, %v1860
    %v1862 = vsel %vm1854, %v1841, %v1844
    %v1863 = vsel %vm1857, %v1850, 920167782
    %v1864 = vsel %vm1856, %v1847, %v1863
    %v1865 = vsel %vm1855, %v1862, %v1864
    %v1866 = vsel %vm1854, %v1844, %v1847
    %v1867 = vsel %vm1857, %v1853, 1326507024
    %v1868 = vsel %vm1856, %v1850, %v1867
    %v1869 = vsel %vm1855, %v1866, %v1868
    %v1870 = vshll.u32 %v1830, 8
    %v1871 = vmul.u32.u64.compose %v1870, %v1869
    %v1872 = vextract.low.u32 %v1871
    %v1873 = vextract.high.u32 %v1871
    %v1874 = vmul.u32.u64.compose %v1870, %v1865
    %v1875 = vextract.low.u32 %v1874
    %v1876 = vextract.high.u32 %v1874
    %v1877 = vmul.u32 %v1870, %v1861
    %v1878 = vadd.s32 %v1873, %v1875
    %vm1879 = vc.u32 %v1873, %v1875
    %v1880 = vadd.s32 %v1876, 1
    %v1881 = vsel %vm1879, %v1880, %v1876
    %v1882 = vadd.s32 %v1877, %v1881
    %v1883 = vadd.s32 %v1882, 536870912
    %v1884 = vshrl.u32 %v1883, 30
    %v1885 = vshll.u32 %v1884, 30
    %v1886 = vsub.s32 %v1882, %v1885
    %vm1887 = vcmp.lt.s32.totalorder %v1886, 0
    %v1888 = vsub.s32 0, %v1886
    %v1889 = vsel %vm1887, %v1888, %v1886
    %v1890 = vclz %v1889
    %v1891 = vsub.s32 %v1890, 2
    %vm1892 = vcmp.gt.s32.totalorder 0, %v1891
    %v1893 = vsel %vm1892, 0, %v1891
    %v1894 = vsub.s32 32, %v1893
    %v1895 = vshll.u32 %v1886, %v1893
    %v1896 = vshrl.u32 %v1878, %v1894
    %v1897 = vor.u32 %v1895, %v1896
    %v1898 = vsub.s32 4294967266, %v1893
    %v1899 = vadd.s32 %v1898, 127
    %v1900 = vshll.u32 %v1899, 23
    %v1901 = vor.u32 4788187, %v1900
    %v1902 = vand.u32 2147483647, %v1901
    %v1904 = vcvt.s32.f32 %v1897
    %v1905 = vmul.f32 %v1904, %v1902
    %v1906 = vxor.u32 %v1905, 2147483648
    %v1907 = vsel %vm1824, %v1906, %v1905
    %v1908 = vsub.s32 4, %v1884
    %v1909 = vsel %vm1824, %v1908, %v1884
    %v1910 = vsel %vm1823, %v1627, %v1907
    %v1911 = vsel %vm1823, 0, %v1909
    %v1912 = vcosq.f32.pop %v1910
    %v1913 = vsinq.f32.pop %v1910
    %vm1914 = vweird.f32 %v1627
    %v1915 = vand.u32 %v1911, 3
    %vm1916 = vcmp.lt.s32.totalorder %v1915, 2
    %vm1917 = vcmp.eq.s32.totalorder %v1915, 0
    %v1918 = vxor.u32 %v1913, 2147483648
    %v1919 = vsel %vm1917, %v1912, %v1918
    %vm1920 = vcmp.eq.s32.totalorder %v1915, 2
    %v1921 = vxor.u32 %v1912, 2147483648
    %v1922 = vsel %vm1920, %v1921, %v1913
    %v1923 = vsel %vm1916, %v1919, %v1922
    %v1924 = vsel %vm1914, nan, %v1923
    %v1925 = vmul.f32 %v1706, %v1717
    %1927 = vrot.lane.b32.xlu0 %v1821, 19
    %v1928 = vpop.permute.xlu0 %1927
    %1931 = vrot.lane.b32.xlu0 %v1924, 38
    %v1932 = vpop.permute.xlu0 %1931
    %1935 = vrot.lane.b32.xlu0 %v1925, 57
    %v1936 = vpop.permute.xlu0 %1935
    %v1938 = vsel %vm1631, %v1627, %v1928
    %v1939 = vsel %vm1716, %v1938, %v1932
    %vm1940 = vcmask 465920
    %v1941 = vsel %vm1940, %v1939, %v1936
    %v1942 = vld [vmem:[%s11] sm:$0xff]
    %v1943 = vld [vmem:[%s11 + $0x8] sm:$0xff]
    %v1944 = vld [vmem:[%s11 + $0x10] sm:$0xff]
    %v1945 = vld [vmem:[%s11 + $0x18] sm:$0xff]
    %v1946 = vld [vmem:[%s11 + $0x20] sm:$0xff]
    %v1947 = vld [vmem:[%s11 + $0x28] sm:$0xff]
    %v1948 = vld [vmem:[%s11 + $0x30] sm:$0xff]
    %v1949 = vld [vmem:[%s11 + $0x38] sm:$0xff]
    %v1950 = vld [vmem:[%s11 + $0x40] sm:$0xff]
    %v1951 = vld [vmem:[%s11 + $0x48] sm:$0xff]
    %v1952 = vld [vmem:[%s11 + $0x50] sm:$0xff]
    %v1953 = vld [vmem:[%s11 + $0x58] sm:$0xff]
    %v1954 = vld [vmem:[%s11 + $0x60] sm:$0xff]
    %v1955 = vld [vmem:[%s11 + $0x68] sm:$0xff]
    %v1956 = vld [vmem:[%s11 + $0x70] sm:$0x3]
    %v1957 = vld [vmem:[%s12] sm:$0x1]
    %v1959 = vlaneseq
    %v1960 = vshrl.u32 %v1959, 7
    %v1961 = vsub.s32 0, %v1960
    %v1962 = vrot.slane %v1957, %v1961
    %vm1964 = vcmask 932864
    %v1966 = vsel %vm1964, %v1941, 0
    %vm1968 = vcmask 1041408
    %v1970 = vsel %vm1968, %v1956, 0
    %1972 = vmatprep.subr.mxu0 0.0
    %1973 = vmatpush1.msra.mxu0 %v1942
    %1974 = vmatprep.subr.mxu0 0.0
    %1975 = vmatpush1.msra.mxu0 %v1943
    %1976 = vmatprep.subr.mxu0 0.0
    %1977 = vmatpush1.msra.mxu0 %v1944
    %1978 = vmatprep.subr.mxu0 0.0
    %1979 = vmatpush1.msra.mxu0 %v1945
    %1980 = vmatprep.subr.mxu0 0.0
    %1981 = vmatpush1.msra.mxu0 %v1946
    %1982 = vmatprep.subr.mxu0 0.0
    %1983 = vmatpush1.msra.mxu0 %v1947
    %1984 = vmatprep.subr.mxu0 0.0
    %1985 = vmatpush1.msra.mxu0 %v1948
    %1986 = vmatprep.subr.mxu0 0.0
    %1987 = vmatpush1.msra.mxu0 %v1949
    %1988 = vmatprep.subr.mxu0 0.0
    %1989 = vmatpush1.msra.mxu0 %v1950
    %1990 = vmatprep.subr.mxu0 0.0
    %1991 = vmatpush1.msra.mxu0 %v1951
    %1992 = vmatprep.subr.mxu0 0.0
    %1993 = vmatpush1.msra.mxu0 %v1952
    %1994 = vmatprep.subr.mxu0 0.0
    %1995 = vmatpush1.msra.mxu0 %v1953
    %1996 = vmatprep.subr.mxu0 0.0
    %1997 = vmatpush1.msra.mxu0 %v1954
    %1998 = vmatprep.subr.mxu0 0.0
    %1999 = vmatpush1.msra.mxu0 %v1955
    %2000 = vmatprep.subr.mxu0 0.0
    %2001 = vmatpush1.msra.mxu0 %v1970
    %2002 = vmatprep.subr.mxu0 0.0
    %2003 = vmatpush1.msra.mxu0 0.0
    %2004 = vmatprep.subr.mxu0 0.0
    %2005 = vmatpush1.msra.mxu0 0.0
    %2006 = vmatprep.subr.mxu0 0.0
    %2007 = vmatpush1.msra.mxu0 0.0
    %2008 = vmatprep.subr.mxu0 0.0
    %2009 = vmatpush1.msra.mxu0 0.0
    %2010 = vmatprep.subr.mxu0 0.0
    %2011 = vmatpush1.msra.mxu0 0.0
    %2012 = vmatprep.subr.mxu0 0.0
    %2013 = vmatpush1.msra.mxu0 0.0
    %2014 = vmatprep.subr.mxu0 0.0
    %2015 = vmatpush1.msra.mxu0 0.0
    %2016 = vmatprep.subr.mxu0 0.0
    %2017 = vmatpush1.msra.mxu0 0.0
    %2018 = vmatprep.subr.mxu0 0.0
    %2019 = vmatpush1.msra.mxu0 0.0
    %2020 = vmatprep.subr.mxu0 0.0
    %2021 = vmatpush1.msra.mxu0 0.0
    %2022 = vmatprep.subr.mxu0 0.0
    %2023 = vmatpush1.msra.mxu0 0.0
    %2024 = vmatprep.subr.mxu0 0.0
    %2025 = vmatpush1.msra.mxu0 0.0
    %2026 = vmatprep.subr.mxu0 0.0
    %2027 = vmatpush1.msra.mxu0 0.0
    %2028 = vmatprep.subr.mxu0 0.0
    %2029 = vmatpush1.msra.mxu0 0.0
    %2030 = vmatprep.subr.mxu0 0.0
    %2031 = vmatpush1.msra.mxu0 0.0
    %2032 = vmatprep.subr.mxu0 0.0
    %2033 = vmatpush1.msra.mxu0 0.0
    %2034 = vmatprep.subr.mxu0 0.0
    %2035 = vmatpush1.msra.mxu0 0.0
    %2036 = vmatprep.mubr.f32.mxu0 0.0
    %2037 = vmatmul.mubr.f32.gmra.mrb[0].mxu0 %v1966
    %v2038 = vpop.f32.mrb[0].mxu0
    %v2039 = vadd.f32 %v1962, %v2038
    %v2040 = vpop.f32.mrb[0].mxu0
    %2041 = vdwg.mxu0
    %v2042 = vmul.f32 %v2039, 0.1
    %v2043 = vadd.f32 %v1621, %v2042
    %vm2044 = vcmask 19456
    %2045 = vst.msk [vmem:[#allocation7] sm:$0xf] %vm2044, %v2043
    // Predicated region
    $region62: #{tpu_custom_call.1} parent=1 // pred_check
      _
    $region63: #{tpu_custom_call.1} parent=1 // pred_check_branch
      %2047 = sbr.rel (0) target = $region65
    $region64: #{tpu_custom_call.1} parent=1 // pred_region
      %s2049 = ssub.s32 64, 64
      %2050 = vsyncadd [#allocation4], %s2049
      %s2052 = sshll.u32 [#allocation7], 4
      %s2053 = int_to_ptr.vmem [resolvable:$true] %s2052
      %2055 = dma.vmem_to_hbm [thread:$0]  %s2053, 64, %s13, [#allocation4]
    $region65: #{tpu_custom_call.1} parent=1 // pred_fallthru
      _
    // Predicated region
    $region66: #{tpu_custom_call.1} parent=1 // pred_check
      _
    $region67: #{tpu_custom_call.1} parent=1 // pred_check_branch
      %2057 = sbr.rel (0) target = $region69
    $region68: #{tpu_custom_call.1} parent=1 // pred_region
      %2058 = dma.done [#allocation4], 64
    $region69: #{tpu_custom_call.1} parent=1 // pred_fallthru
      _
    %2059 = vsyncpa [#allocation3], 1
    %2060 = vsyncpa [#allocation6], 1
    %2061 = vsyncpa [#allocation4], 1

</llo_original>
